<compile_context>
chip_gen: v5e
topology: v5e:2x2
jax: 0.10.0
libtpu: 0.0.40
codegen_flags: <defaults>
</compile_context>

<pallas_src>
import math

import jax
import jax.numpy as jnp
from jax import lax
from jax.experimental import pallas as pl
from jax.experimental.pallas import tpu as pltpu

LN_EPS = 1e-5                      # torch.nn.LayerNorm default
MATMUL_DTYPE = jnp.bfloat16        # MXU-native; accumulation stays f32


def _layernorm(x, g, b):
    mu = jnp.mean(x, axis=-1, keepdims=True)
    var = jnp.mean((x - mu) ** 2, axis=-1, keepdims=True)
    return (x - mu) * lax.rsqrt(var + LN_EPS) * g + b


def _gelu_tanh(x):
    # TODO(synk): torch F.gelu defaults to the exact erf form; tanh approximation
    # used (erf has no guaranteed Mosaic lowering) -> tiny numerical delta.
    c = math.sqrt(2.0 / math.pi)
    return 0.5 * x * (1.0 + jnp.tanh(c * (x + 0.044715 * x * x * x)))


# ----------------------------------------------------------------------------
# Fused kernel: all SLiMPerformer layers + output head.
#   grid = (B // Bb, n_layers); activation lives in VMEM scratch (L, Bb, H).
# ----------------------------------------------------------------------------
def _make_kernel(n_heads, chunk):
    def kernel(x0_ref, ln1g_ref, ln1b_ref, wqkv_ref, bqkv_ref,
               ln2g_ref, ln2b_ref, wu_ref, bu_ref, wo_ref, bo_ref,
               wout_ref, bout_ref, out_ref, x_sc):
        layer = pl.program_id(1)
        n_layers = pl.num_programs(1)
        L, Bb, H = x_sc.shape
        nH = n_heads
        Dh = H // nH
        G = Bb * nH                   # fold batch + heads into one batch dim
        Lc = chunk
        n_chunks = L // Lc
        M = L * Bb

        @pl.when(layer == 0)
        def _():
            x_sc[...] = x0_ref[...]

        # ---------------- attention: x <- x + attn(LN1(x)) ------------------
        xn = _layernorm(x_sc[...].reshape(M, H), ln1g_ref[...], ln1b_ref[...])
        qkv = (jnp.dot(xn.astype(MATMUL_DTYPE), wqkv_ref[...],
                       preferred_element_type=jnp.float32) + bqkv_ref[...])

        def to_heads(t2d):                       # (M, H) -> (G, L, Dh)
            t4 = t2d.reshape(L, Bb, nH, Dh)
            return jnp.transpose(t4, (1, 2, 0, 3)).reshape(G, L, Dh)

        qh = to_heads(jnp.maximum(qkv[:, :H], 0.0))       # 'relu' feature map
        kh = to_heads(jnp.maximum(qkv[:, H:2 * H], 0.0))
        vh = to_heads(qkv[:, 2 * H:])

        row = lax.broadcasted_iota(jnp.int32, (Lc, Lc), 0)
        col = lax.broadcasted_iota(jnp.int32, (Lc, Lc), 1)
        cmask = (col <= row).astype(jnp.float32)          # causal within chunk

        kv = None                                         # carried (G, Dh, Dh)
        ks = None                                         # carried (G, Dh)
        for c in range(n_chunks):
            s0 = c * Lc
            qc = qh[:, s0:s0 + Lc, :]
            kc = kh[:, s0:s0 + Lc, :]
            vc = vh[:, s0:s0 + Lc, :]
            # intra-chunk causal contribution: masked per-head (Lc, Lc) matmul
            s = jnp.einsum('gid,gjd->gij', qc, kc,
                           preferred_element_type=jnp.float32) * cmask
            num = jnp.einsum('gij,gjd->gid', s, vc,
                             preferred_element_type=jnp.float32)
            den = jnp.sum(s, axis=-1)                     # (G, Lc)
            if c > 0:                                     # inter-chunk carry
                num = num + jnp.einsum('gid,gde->gie', qc, kv,
                                       preferred_element_type=jnp.float32)
                den = den + jnp.sum(qc * ks[:, None, :], axis=-1)
            out_g = num / (den[..., None] + 1e-16)        # exact divide (gates den)
            attn_c = jnp.transpose(out_g.reshape(Bb, nH, Lc, Dh),
                                   (2, 0, 1, 3)).reshape(Lc, Bb, H)
            sl = pl.ds(s0, Lc)
            # residual included, one full-width store per chunk
            x_sc[sl, :, :] = x_sc[sl, :, :] + attn_c
            if c + 1 < n_chunks:                          # update carried state
                kv_u = jnp.einsum('gjd,gje->gde', kc, vc,
                                  preferred_element_type=jnp.float32)
                ks_u = jnp.sum(kc, axis=1)
                kv = kv_u if kv is None else kv + kv_u
                ks = ks_u if ks is None else ks + ks_u

        # ---------------- FFN applied twice (SLiMPerformerLayer) ------------
        Fd = wu_ref.shape[-1]
        g2 = jnp.broadcast_to(ln2g_ref[...], (M, H))      # hoisted broadcasts
        b2 = jnp.broadcast_to(ln2b_ref[...], (M, H))
        bu = jnp.broadcast_to(bu_ref[...], (M, Fd))
        bo = jnp.broadcast_to(bo_ref[...], (M, H))
        wu = wu_ref[...]
        wo = wo_ref[...]
        y = x_sc[...].reshape(M, H)
        for _ in range(2):
            yn = _layernorm(y, g2, b2).astype(MATMUL_DTYPE)
            hmid = _gelu_tanh(jnp.dot(yn, wu, preferred_element_type=jnp.float32) + bu)
            y = y + jnp.dot(hmid.astype(MATMUL_DTYPE), wo,
                            preferred_element_type=jnp.float32) + bo
        x_sc[...] = y.reshape(L, Bb, H)

        # ---------------- last layer: last-position logits + log_softmax ----
        @pl.when(layer == n_layers - 1)
        def _():
            x_last = x_sc[L - 1].astype(MATMUL_DTYPE)               # (Bb, H)
            logits = (jnp.dot(x_last, wout_ref[...],
                              preferred_element_type=jnp.float32) + bout_ref[...])
            m = jnp.max(logits, axis=-1, keepdims=True)
            z = logits - m
            lse = jnp.log(jnp.sum(jnp.exp(z), axis=-1, keepdims=True))
            out_ref[...] = z - lse                                   # (Bb, Vpad)

    return kernel


def slim_performer_forward(x0, kp, *, n_layers, n_heads, batch_block=None,
                           chunk_size=None):
    B, L, H = x0.shape
    Vp = kp["w_out"].shape[1]
    Bb = B if batch_block is None else batch_block
    # v7x: pass batch_block = B // 2 (multiple of 8) so the leading "parallel"
    # grid axis has >= 2 steps and both TensorCores are used; keep Bb = B on
    # single-TC v5e/v6e to avoid extra per-step overhead.
    assert B % Bb == 0 and (Bb == B or Bb % 8 == 0)
    if chunk_size is None:
        chunk_size = L if L <= 256 else 256
    if L % chunk_size != 0:
        chunk_size = L                       # fallback: single chunk
    grid = (B // Bb, n_layers)

    x0_t = jnp.transpose(x0, (1, 0, 2))      # (L, B, H): position-major layout

    def per_layer(a):                        # stacked (n_layers, d1, d2)
        return pl.BlockSpec((None,) + a.shape[1:], lambda bb, l: (l, 0, 0))

    def whole(a):                            # same full block every grid step
        return pl.BlockSpec(a.shape, lambda bb, l, _nd=a.ndim: (0,) * _nd)

    in_specs = [
        pl.BlockSpec((L, Bb, H), lambda bb, l: (0, bb, 0)),      # x0 (resident)
        per_layer(kp["ln1g"]), per_layer(kp["ln1b"]),
        per_layer(kp["wqkv"]), per_layer(kp["bqkv"]),
        per_layer(kp["ln2g"]), per_layer(kp["ln2b"]),
        per_layer(kp["wu"]), per_layer(kp["bu"]),
        per_layer(kp["wo"]), per_layer(kp["bo"]),
        whole(kp["w_out"]), whole(kp["b_out"]),
    ]

    # VMEM budget: double-buffered per-layer weight blocks + resident blocks +
    # activation scratch + out block, clamped to [32, 48] MiB (v7x-safe).
    per_layer_keys = ["ln1g", "ln1b", "wqkv", "bqkv", "ln2g", "ln2b",
                      "wu", "bu", "wo", "bo"]
    step_bytes = 2 * sum(math.prod(kp[k].shape[1:]) * kp[k].dtype.itemsize
                         for k in per_layer_keys)
    step_bytes += sum(kp[k].size * kp[k].dtype.itemsize for k in ("w_out", "b_out"))
    step_bytes += 2 * L * Bb * H * 4 + Bb * Vp * 4       # x0 block + scratch + out
    vmem_limit = int(min(max(2 * step_bytes, 32 << 20), 48 << 20))
    # TODO(synk): at production vocab sizes, tile w_out over Vp in the epilogue
    # instead of keeping it resident via whole() (dead weight on non-last layers).

    return pl.pallas_call(
        _make_kernel(n_heads, chunk_size),
        out_shape=jax.ShapeDtypeStruct((B, Vp), jnp.float32),
        grid=grid,
        in_specs=in_specs,
        out_specs=pl.BlockSpec((Bb, Vp), lambda bb, l: (bb, 0)),
        scratch_shapes=[pltpu.VMEM((L, Bb, H), jnp.float32)],
        compiler_params=pltpu.CompilerParams(
            dimension_semantics=("parallel", "arbitrary"),
            vmem_limit_bytes=vmem_limit),
    )(x0_t, kp["ln1g"], kp["ln1b"], kp["wqkv"], kp["bqkv"],
      kp["ln2g"], kp["ln2b"], kp["wu"], kp["bu"], kp["wo"], kp["bo"],
      kp["w_out"], kp["b_out"])


# ----------------------------------------------------------------------------
# Glue (embedding lookup, positional concat, reshape) in plain JAX.
# ----------------------------------------------------------------------------
def concat_pos_embs(x, vocab_dim):
    pos_emb_size = vocab_dim // 2
    B, S, _ = x.shape
    positions = jnp.arange(S, dtype=x.dtype)
    freqs = jnp.exp(jnp.arange(0, pos_emb_size, 2, dtype=x.dtype)
                    * (-math.log(10000.0) / pos_emb_size))
    args = positions[None, :, None] * freqs[None, None, :]
    ones = jnp.ones((B, 1, 1), x.dtype)
    return jnp.concatenate([x, jnp.sin(args) * ones, jnp.cos(args) * ones], axis=2)


def embed_inputs(inp, params, *, vocab_dim, hidden_dim):
    scale = hidden_dim // vocab_dim
    x = jnp.take(params["emb"], inp, axis=0)          # (B, S, vocab_dim // 2)
    x = concat_pos_embs(x, vocab_dim)                 # (B, S, vocab_dim)
    B, S, Vd = x.shape
    return x.reshape(B, S // scale, Vd * scale)       # (B, L, hidden_dim)


def distillation_forward(inp, params, kparams, *, vocab_dim, hidden_dim,
                         n_layers, n_heads, vocab_size):
    x0 = embed_inputs(inp, params, vocab_dim=vocab_dim, hidden_dim=hidden_dim)
    logp_pad = slim_performer_forward(x0, kparams, n_layers=n_layers,
                                      n_heads=n_heads)
    logp = logp_pad[:, :vocab_size]
    # model_list = [0, 0, 1]: final_logits == new_logits, both returns coincide.
    return logp, logp


# ----------------------------------------------------------------------------
# Parameters (torch Linear-style uniform init), kernel-side packing, reference.
# ----------------------------------------------------------------------------
def init_params(key, vocab_size, vocab_dim, hidden_dim, ffn_dim, n_layers):
    k_emb, k_out, k_layers = jax.random.split(key, 3)

    def lin(k, din, dout):
        k1, k2 = jax.random.split(k)
        bound = 1.0 / math.sqrt(din)
        w = jax.random.uniform(k1, (din, dout), jnp.float32, -bound, bound)
        b = jax.random.uniform(k2, (1, dout), jnp.float32, -bound, bound)
        return w, b

    emb = jax.random.normal(k_emb, (vocab_size, vocab_dim // 2), jnp.float32)
    w_out, b_out = lin(k_out, hidden_dim, vocab_size)

    names_dims = [("q", hidden_dim, hidden_dim), ("k", hidden_dim, hidden_dim),
                  ("v", hidden_dim, hidden_dim), ("u", hidden_dim, ffn_dim),
                  ("o", ffn_dim, hidden_dim)]
    acc = {("w" + n): [] for n, _, _ in names_dims}
    acc.update({("b" + n): [] for n, _, _ in names_dims})
    for lk in jax.random.split(k_layers, n_layers):
        for (n, din, dout), kk in zip(names_dims, jax.random.split(lk, 5)):
            w, b = lin(kk, din, dout)
            acc["w" + n].append(w)
            acc["b" + n].append(b)
    p = {name: jnp.stack(v) for name, v in acc.items()}
    p.update(
        ln1g=jnp.ones((n_layers, 1, hidden_dim), jnp.float32),
        ln1b=jnp.zeros((n_layers, 1, hidden_dim), jnp.float32),
        ln2g=jnp.ones((n_layers, 1, hidden_dim), jnp.float32),
        ln2b=jnp.zeros((n_layers, 1, hidden_dim), jnp.float32),
        emb=emb, w_out=w_out, b_out=b_out)
    return p


def pack_kernel_params(p, *, vocab_size):
    H = p["wq"].shape[1]
    # fused qkv projection: one matmul / one weight DMA per layer step
    wqkv = jnp.concatenate([p["wq"], p["wk"], p["wv"]], axis=-1)   # (nl, H, 3H)
    bqkv = jnp.concatenate([p["bq"], p["bk"], p["bv"]], axis=-1)   # (nl, 1, 3H)

    Vp = ((vocab_size + 127) // 128) * 128            # lane-dense logits
    w_out_p = jnp.zeros((H, Vp), jnp.float32).at[:, :vocab_size].set(p["w_out"])
    b_out_p = jnp.full((1, Vp), -1e30, jnp.float32).at[:, :vocab_size].set(p["b_out"])

    return dict(
        ln1g=p["ln1g"], ln1b=p["ln1b"], ln2g=p["ln2g"], ln2b=p["ln2b"],
        wqkv=wqkv.astype(MATMUL_DTYPE), bqkv=bqkv,
        wu=p["wu"].astype(MATMUL_DTYPE), bu=p["bu"],
        wo=p["wo"].astype(MATMUL_DTYPE), bo=p["bo"],
        w_out=w_out_p.astype(MATMUL_DTYPE), b_out=b_out_p)


def reference_forward(inp, p, *, vocab_dim, hidden_dim, n_heads, vocab_size):
    """Pure-JAX float32 reference (direct masked formulation)."""
    x = embed_inputs(inp, p, vocab_dim=vocab_dim, hidden_dim=hidden_dim)
    B, L, H = x.shape
    Dh = H // n_heads
    n_layers = p["wq"].shape[0]
    mask = jnp.tril(jnp.ones((L, L), jnp.float32))
    for l in range(n_layers):
        skip = x
        xn = _layernorm(x, p["ln1g"][l], p["ln1b"][l])
        q = jnp.maximum(xn @ p["wq"][l] + p["bq"][l], 0.0)
        k = jnp.maximum(xn @ p["wk"][l] + p["bk"][l], 0.0)
        v = xn @ p["wv"][l] + p["bv"][l]
        qh = q.reshape(B, L, n_heads, Dh)
        kh = k.reshape(B, L, n_heads, Dh)
        vh = v.reshape(B, L, n_heads, Dh)
        s = jnp.einsum("bihd,bjhd->bhij", qh, kh) * mask
        num = jnp.einsum("bhij,bjhd->bihd", s, vh)
        den = jnp.sum(s, axis=-1).transpose(0, 2, 1)[..., None]   # (B, i, h, 1)
        x = skip + (num / (den + 1e-16)).reshape(B, L, H)
        for _ in range(2):
            skip2 = x
            xn2 = _layernorm(x, p["ln2g"][l], p["ln2b"][l])
            hmid = _gelu_tanh(xn2 @ p["wu"][l] + p["bu"][l])
            x = skip2 + hmid @ p["wo"][l] + p["bo"][l]
    logits = x[:, -1, :] @ p["w_out"] + p["b_out"]
    return jax.nn.log_softmax(logits, axis=-1)


if __name__ == "__main__":
    VOCAB_SIZE = 16
    VOCAB_DIM = 8          # pos_emb_size = 4
    HIDDEN_DIM = 32        # scale = 4; n_heads = 2 -> head_dim = 16
    FFN_DIM = 64
    N_LAYERS = 2
    N_HEADS = 2
    BATCH = 2
    SEQ = 16               # divisible by scale -> L = 4 after reshape

    key = jax.random.PRNGKey(0)
    kparam, kinp = jax.random.split(key)
    params = init_params(kparam, VOCAB_SIZE, VOCAB_DIM, HIDDEN_DIM, FFN_DIM,
                         N_LAYERS)
    kernel_params = pack_kernel_params(params, vocab_size=VOCAB_SIZE)
    inp = jax.random.randint(kinp, (BATCH, SEQ), 0, VOCAB_SIZE, dtype=jnp.int32)

    out, new_logp = distillation_forward(
        inp, params, kernel_params, vocab_dim=VOCAB_DIM, hidden_dim=HIDDEN_DIM,
        n_layers=N_LAYERS, n_heads=N_HEADS, vocab_size=VOCAB_SIZE)
    jax.block_until_ready((out, new_logp))

    assert out.shape == (BATCH, VOCAB_SIZE)
    assert new_logp.shape == (BATCH, VOCAB_SIZE)
    assert bool(jnp.all(jnp.isfinite(out)))

    ref = reference_forward(inp, params, vocab_dim=VOCAB_DIM,
                            hidden_dim=HIDDEN_DIM, n_heads=N_HEADS,
                            vocab_size=VOCAB_SIZE)
    err = float(jnp.max(jnp.abs(out - ref)))
    # Loose tolerance: kernel uses bf16 matmul operands (f32 accumulation).
    assert err < 0.3, f"kernel deviates from f32 reference: max abs err {err}"
    print("KERNEL_OK")
</pallas_src>

<mosaic_0001>
module attributes {stable_mosaic.version = 11 : i64} {
  func.func @kernel(%arg0: i32, %arg1: i32, %arg2: memref<4x2x32xf32, #tpu.memory_space<vmem>>, %arg3: memref<1x1x32xf32, #tpu.memory_space<vmem>>, %arg4: memref<1x1x32xf32, #tpu.memory_space<vmem>>, %arg5: memref<1x32x96xbf16, #tpu.memory_space<vmem>>, %arg6: memref<1x1x96xf32, #tpu.memory_space<vmem>>, %arg7: memref<1x1x32xf32, #tpu.memory_space<vmem>>, %arg8: memref<1x1x32xf32, #tpu.memory_space<vmem>>, %arg9: memref<1x32x64xbf16, #tpu.memory_space<vmem>>, %arg10: memref<1x1x64xf32, #tpu.memory_space<vmem>>, %arg11: memref<1x64x32xbf16, #tpu.memory_space<vmem>>, %arg12: memref<1x1x32xf32, #tpu.memory_space<vmem>>, %arg13: memref<32x128xbf16, #tpu.memory_space<vmem>>, %arg14: memref<1x128xf32, #tpu.memory_space<vmem>>, %arg15: memref<2x128xf32, #tpu.memory_space<vmem>>, %arg16: memref<4x2x32xf32, #tpu.memory_space<vmem>>) attributes {dimension_semantics = [#tpu.dimension_semantics<parallel>, #tpu.dimension_semantics<arbitrary>], iteration_bounds = array<i64: 1, 2>, scalar_prefetch = 0 : i64, scratch_operands = 1 : i64, tpu.core_type = #tpu.core_type<tc>, window_params = [{transform_indices = @transform_0, window_bounds = array<i64: 4, 2, 32>}, {transform_indices = @transform_1, window_bounds = array<i64: 1, 1, 32>}, {transform_indices = @transform_2, window_bounds = array<i64: 1, 1, 32>}, {transform_indices = @transform_3, window_bounds = array<i64: 1, 32, 96>}, {transform_indices = @transform_4, window_bounds = array<i64: 1, 1, 96>}, {transform_indices = @transform_5, window_bounds = array<i64: 1, 1, 32>}, {transform_indices = @transform_6, window_bounds = array<i64: 1, 1, 32>}, {transform_indices = @transform_7, window_bounds = array<i64: 1, 32, 64>}, {transform_indices = @transform_8, window_bounds = array<i64: 1, 1, 64>}, {transform_indices = @transform_9, window_bounds = array<i64: 1, 64, 32>}, {transform_indices = @transform_10, window_bounds = array<i64: 1, 1, 32>}, {pipeline_mode = #tpu.pipeline_mode<synchronous>, transform_indices = @transform_11, window_bounds = array<i64: 32, 128>}, {pipeline_mode = #tpu.pipeline_mode<synchronous>, transform_indices = @transform_12, window_bounds = array<i64: 1, 128>}, {transform_indices = @transform_13, window_bounds = array<i64: 2, 128>}]} {
    %c0_i32 = arith.constant 0 : i32
    %0 = arith.cmpi eq, %arg1, %c0_i32 : i32
    %1 = arith.extui %0 : i1 to i32
    %c0_i32_0 = arith.constant 0 : i32
    %2 = arith.cmpi ne, %1, %c0_i32_0 : i32
    scf.if %2 {
      %c0_79 = arith.constant 0 : index
      %c0_80 = arith.constant 0 : index
      %c0_81 = arith.constant 0 : index
      %184 = vector.load %arg2[%c0_79, %c0_80, %c0_81] : memref<4x2x32xf32, #tpu.memory_space<vmem>>, vector<4x2x32xf32>
      %c0_82 = arith.constant 0 : index
      %c0_83 = arith.constant 0 : index
      %c0_84 = arith.constant 0 : index
      %185 = vector.load %arg16[%c0_82, %c0_83, %c0_84] : memref<4x2x32xf32, #tpu.memory_space<vmem>>, vector<4x2x32xf32>
      tpu.vector_store %arg16[%c0_82, %c0_83, %c0_84], %184 {strides = array<i32>} : memref<4x2x32xf32, #tpu.memory_space<vmem>>, vector<4x2x32xf32>,
    } else {
    }
    %c0 = arith.constant 0 : index
    %c0_1 = arith.constant 0 : index
    %c0_2 = arith.constant 0 : index
    %3 = vector.load %arg16[%c0, %c0_1, %c0_2] : memref<4x2x32xf32, #tpu.memory_space<vmem>>, vector<4x2x32xf32>
    %4 = vector.shape_cast %3 : vector<4x2x32xf32> to vector<8x32xf32>
    %c0_3 = arith.constant 0 : index
    %c0_4 = arith.constant 0 : index
    %c0_5 = arith.constant 0 : index
    %5 = vector.load %arg3[%c0_3, %c0_4, %c0_5] : memref<1x1x32xf32, #tpu.memory_space<vmem>>, vector<1x1x32xf32>
    %6 = vector.shape_cast %5 : vector<1x1x32xf32> to vector<1x32xf32>
    %c0_6 = arith.constant 0 : index
    %c0_7 = arith.constant 0 : index
    %c0_8 = arith.constant 0 : index
    %7 = vector.load %arg4[%c0_6, %c0_7, %c0_8] : memref<1x1x32xf32, #tpu.memory_space<vmem>>, vector<1x1x32xf32>
    %8 = vector.shape_cast %7 : vector<1x1x32xf32> to vector<1x32xf32>
    %cst = arith.constant dense<0.000000e+00> : vector<8xf32>
    %9 = vector.multi_reduction <add>, %4, %cst [1] : vector<8x32xf32> to vector<8xf32>
    %10 = vector.shape_cast %9 : vector<8xf32> to vector<8x1xf32>
    %cst_9 = arith.constant 3.200000e+01 : f32
    %11 = vector.broadcast %cst_9 : f32 to vector<8x1xf32>
    %12 = arith.divf %10, %11 : vector<8x1xf32>
    %13 = vector.broadcast %12 : vector<8x1xf32> to vector<8x32xf32>
    %14 = arith.subf %4, %13 : vector<8x32xf32>
    %15 = arith.mulf %14, %14 : vector<8x32xf32>
    %cst_10 = arith.constant dense<0.000000e+00> : vector<8xf32>
    %16 = vector.multi_reduction <add>, %15, %cst_10 [1] : vector<8x32xf32> to vector<8xf32>
    %17 = vector.shape_cast %16 : vector<8xf32> to vector<8x1xf32>
    %cst_11 = arith.constant 3.200000e+01 : f32
    %18 = vector.broadcast %cst_11 : f32 to vector<8x1xf32>
    %19 = arith.divf %17, %18 : vector<8x1xf32>
    %20 = vector.broadcast %12 : vector<8x1xf32> to vector<8x32xf32>
    %21 = arith.subf %4, %20 : vector<8x32xf32>
    %cst_12 = arith.constant 9.99999974E-6 : f32
    %22 = vector.broadcast %cst_12 : f32 to vector<8x1xf32>
    %23 = arith.addf %19, %22 : vector<8x1xf32>
    %24 = math.rsqrt %23 : vector<8x1xf32>
    %25 = vector.broadcast %24 : vector<8x1xf32> to vector<8x32xf32>
    %26 = arith.mulf %21, %25 : vector<8x32xf32>
    %27 = vector.broadcast %6 : vector<1x32xf32> to vector<8x32xf32>
    %28 = arith.mulf %26, %27 : vector<8x32xf32>
    %29 = vector.broadcast %8 : vector<1x32xf32> to vector<8x32xf32>
    %30 = arith.addf %28, %29 : vector<8x32xf32>
    %31 = arith.truncf %30 : vector<8x32xf32> to vector<8x32xbf16>
    %c0_13 = arith.constant 0 : index
    %c0_14 = arith.constant 0 : index
    %c0_15 = arith.constant 0 : index
    %32 = vector.load %arg5[%c0_13, %c0_14, %c0_15] : memref<1x32x96xbf16, #tpu.memory_space<vmem>>, vector<1x32x96xbf16>
    %33 = vector.shape_cast %32 : vector<1x32x96xbf16> to vector<32x96xbf16>
    %cst_16 = arith.constant dense<0.000000e+00> : vector<8x96xf32>
    %34 = tpu.matmul %31, %33, %cst_16 {dimension_numbers = #tpu.dot_dimension_numbers<[1], [0], [0], [1], [0, 0, 1, 1], [], []>} : vector<8x32xbf16>, vector<32x96xbf16>, vector<8x96xf32> -> vector<8x96xf32>
    %c0_17 = arith.constant 0 : index
    %c0_18 = arith.constant 0 : index
    %c0_19 = arith.constant 0 : index
    %35 = vector.load %arg6[%c0_17, %c0_18, %c0_19] : memref<1x1x96xf32, #tpu.memory_space<vmem>>, vector<1x1x96xf32>
    %36 = vector.shape_cast %35 : vector<1x1x96xf32> to vector<1x96xf32>
    %37 = vector.broadcast %36 : vector<1x96xf32> to vector<8x96xf32>
    %38 = arith.addf %34, %37 : vector<8x96xf32>
    %39 = vector.extract_strided_slice %38 {offsets = [0, 0], sizes = [8, 32], strides = [1, 1]} : vector<8x96xf32> to vector<8x32xf32>
    %cst_20 = arith.constant 0.000000e+00 : f32
    %40 = vector.broadcast %cst_20 : f32 to vector<8x32xf32>
    %41 = arith.maximumf %39, %40 : vector<8x32xf32>
    %42 = vector.shape_cast %41 : vector<8x32xf32> to vector<4x2x2x16xf32>
    %43 = tpu.transpose %42, [1, 2, 0, 3] : vector<4x2x2x16xf32> -> vector<2x2x4x16xf32>
    %44 = vector.shape_cast %43 : vector<2x2x4x16xf32> to vector<4x4x16xf32>
    %45 = vector.extract_strided_slice %38 {offsets = [0, 32], sizes = [8, 32], strides = [1, 1]} : vector<8x96xf32> to vector<8x32xf32>
    %cst_21 = arith.constant 0.000000e+00 : f32
    %46 = vector.broadcast %cst_21 : f32 to vector<8x32xf32>
    %47 = arith.maximumf %45, %46 : vector<8x32xf32>
    %48 = vector.shape_cast %47 : vector<8x32xf32> to vector<4x2x2x16xf32>
    %49 = tpu.transpose %48, [1, 2, 0, 3] : vector<4x2x2x16xf32> -> vector<2x2x4x16xf32>
    %50 = vector.shape_cast %49 : vector<2x2x4x16xf32> to vector<4x4x16xf32>
    %51 = vector.extract_strided_slice %38 {offsets = [0, 64], sizes = [8, 32], strides = [1, 1]} : vector<8x96xf32> to vector<8x32xf32>
    %52 = vector.shape_cast %51 : vector<8x32xf32> to vector<4x2x2x16xf32>
    %53 = tpu.transpose %52, [1, 2, 0, 3] : vector<4x2x2x16xf32> -> vector<2x2x4x16xf32>
    %54 = vector.shape_cast %53 : vector<2x2x4x16xf32> to vector<4x4x16xf32>
    %55 = tpu.iota {dimensions = array<i32: 0>} : vector<4x4xi32>
    %56 = tpu.iota {dimensions = array<i32: 1>} : vector<4x4xi32>
    %57 = arith.cmpi sle, %56, %55 : vector<4x4xi32>
    %58 = arith.extui %57 : vector<4x4xi1> to vector<4x4xi32>
    %59 = arith.sitofp %58 : vector<4x4xi32> to vector<4x4xf32>
    "tpu.trace_start"() <{level = 10 : i32, message = "gid,gjd->gij"}> : () -> ()
    %cst_22 = arith.constant dense<0.000000e+00> : vector<4x4x4xf32>
    %60 = tpu.matmul %44, %50, %cst_22 {dimension_numbers = #tpu.dot_dimension_numbers<[2], [2], [1], [1], [0, 0, 0, 1, 1, 1], [0], [0]>} : vector<4x4x16xf32>, vector<4x4x16xf32>, vector<4x4x4xf32> -> vector<4x4x4xf32>
    "tpu.trace_stop"() : () -> ()
    %61 = vector.shape_cast %59 : vector<4x4xf32> to vector<1x4x4xf32>
    %62 = vector.broadcast %61 : vector<1x4x4xf32> to vector<4x4x4xf32>
    %63 = arith.mulf %60, %62 : vector<4x4x4xf32>
    "tpu.trace_start"() <{level = 10 : i32, message = "gij,gjd->gid"}> : () -> ()
    %cst_23 = arith.constant dense<0.000000e+00> : vector<4x4x16xf32>
    %64 = tpu.matmul %63, %54, %cst_23 {dimension_numbers = #tpu.dot_dimension_numbers<[2], [1], [1], [2], [0, 0, 0, 1, 1, 2], [0], [0]>} : vector<4x4x4xf32>, vector<4x4x16xf32>, vector<4x4x16xf32> -> vector<4x4x16xf32>
    "tpu.trace_stop"() : () -> ()
    %cst_24 = arith.constant dense<0.000000e+00> : vector<4x4xf32>
    %65 = vector.multi_reduction <add>, %63, %cst_24 [2] : vector<4x4x4xf32> to vector<4x4xf32>
    %66 = vector.shape_cast %65 : vector<4x4xf32> to vector<4x4x1xf32>
    %cst_25 = arith.constant 1.000000e-16 : f32
    %67 = vector.broadcast %cst_25 : f32 to vector<4x4x1xf32>
    %68 = arith.addf %66, %67 : vector<4x4x1xf32>
    %69 = vector.broadcast %68 : vector<4x4x1xf32> to vector<4x4x16xf32>
    %70 = arith.divf %64, %69 : vector<4x4x16xf32>
    %71 = vector.shape_cast %70 : vector<4x4x16xf32> to vector<2x2x4x16xf32>
    %72 = tpu.transpose %71, [2, 0, 1, 3] : vector<2x2x4x16xf32> -> vector<4x2x2x16xf32>
    %73 = vector.shape_cast %72 : vector<4x2x2x16xf32> to vector<4x2x32xf32>
    %c0_26 = arith.constant 0 : index
    %c0_27 = arith.constant 0 : index
    %c0_28 = arith.constant 0 : index
    %74 = vector.load %arg16[%c0_26, %c0_27, %c0_28] : memref<4x2x32xf32, #tpu.memory_space<vmem>>, vector<4x2x32xf32>
    %75 = arith.addf %74, %73 : vector<4x2x32xf32>
    %c0_29 = arith.constant 0 : index
    %c0_30 = arith.constant 0 : index
    %c0_31 = arith.constant 0 : index
    %76 = vector.load %arg16[%c0_29, %c0_30, %c0_31] : memref<4x2x32xf32, #tpu.memory_space<vmem>>, vector<4x2x32xf32>
    tpu.vector_store %arg16[%c0_29, %c0_30, %c0_31], %75 {strides = array<i32>} : memref<4x2x32xf32, #tpu.memory_space<vmem>>, vector<4x2x32xf32>,
    %c0_32 = arith.constant 0 : index
    %c0_33 = arith.constant 0 : index
    %c0_34 = arith.constant 0 : index
    %77 = vector.load %arg7[%c0_32, %c0_33, %c0_34] : memref<1x1x32xf32, #tpu.memory_space<vmem>>, vector<1x1x32xf32>
    %78 = vector.shape_cast %77 : vector<1x1x32xf32> to vector<1x32xf32>
    %79 = vector.shape_cast %78 : vector<1x32xf32> to vector<1x32xf32>
    %80 = vector.broadcast %79 : vector<1x32xf32> to vector<8x32xf32>
    %c0_35 = arith.constant 0 : index
    %c0_36 = arith.constant 0 : index
    %c0_37 = arith.constant 0 : index
    %81 = vector.load %arg8[%c0_35, %c0_36, %c0_37] : memref<1x1x32xf32, #tpu.memory_space<vmem>>, vector<1x1x32xf32>
    %82 = vector.shape_cast %81 : vector<1x1x32xf32> to vector<1x32xf32>
    %83 = vector.shape_cast %82 : vector<1x32xf32> to vector<1x32xf32>
    %84 = vector.broadcast %83 : vector<1x32xf32> to vector<8x32xf32>
    %c0_38 = arith.constant 0 : index
    %c0_39 = arith.constant 0 : index
    %c0_40 = arith.constant 0 : index
    %85 = vector.load %arg10[%c0_38, %c0_39, %c0_40] : memref<1x1x64xf32, #tpu.memory_space<vmem>>, vector<1x1x64xf32>
    %86 = vector.shape_cast %85 : vector<1x1x64xf32> to vector<1x64xf32>
    %87 = vector.shape_cast %86 : vector<1x64xf32> to vector<1x64xf32>
    %88 = vector.broadcast %87 : vector<1x64xf32> to vector<8x64xf32>
    %c0_41 = arith.constant 0 : index
    %c0_42 = arith.constant 0 : index
    %c0_43 = arith.constant 0 : index
    %89 = vector.load %arg12[%c0_41, %c0_42, %c0_43] : memref<1x1x32xf32, #tpu.memory_space<vmem>>, vector<1x1x32xf32>
    %90 = vector.shape_cast %89 : vector<1x1x32xf32> to vector<1x32xf32>
    %91 = vector.shape_cast %90 : vector<1x32xf32> to vector<1x32xf32>
    %92 = vector.broadcast %91 : vector<1x32xf32> to vector<8x32xf32>
    %c0_44 = arith.constant 0 : index
    %c0_45 = arith.constant 0 : index
    %c0_46 = arith.constant 0 : index
    %93 = vector.load %arg9[%c0_44, %c0_45, %c0_46] : memref<1x32x64xbf16, #tpu.memory_space<vmem>>, vector<1x32x64xbf16>
    %94 = vector.shape_cast %93 : vector<1x32x64xbf16> to vector<32x64xbf16>
    %c0_47 = arith.constant 0 : index
    %c0_48 = arith.constant 0 : index
    %c0_49 = arith.constant 0 : index
    %95 = vector.load %arg11[%c0_47, %c0_48, %c0_49] : memref<1x64x32xbf16, #tpu.memory_space<vmem>>, vector<1x64x32xbf16>
    %96 = vector.shape_cast %95 : vector<1x64x32xbf16> to vector<64x32xbf16>
    %c0_50 = arith.constant 0 : index
    %c0_51 = arith.constant 0 : index
    %c0_52 = arith.constant 0 : index
    %97 = vector.load %arg16[%c0_50, %c0_51, %c0_52] : memref<4x2x32xf32, #tpu.memory_space<vmem>>, vector<4x2x32xf32>
    %98 = vector.shape_cast %97 : vector<4x2x32xf32> to vector<8x32xf32>
    %cst_53 = arith.constant dense<0.000000e+00> : vector<8xf32>
    %99 = vector.multi_reduction <add>, %98, %cst_53 [1] : vector<8x32xf32> to vector<8xf32>
    %100 = vector.shape_cast %99 : vector<8xf32> to vector<8x1xf32>
    %cst_54 = arith.constant 3.200000e+01 : f32
    %101 = vector.broadcast %cst_54 : f32 to vector<8x1xf32>
    %102 = arith.divf %100, %101 : vector<8x1xf32>
    %103 = vector.broadcast %102 : vector<8x1xf32> to vector<8x32xf32>
    %104 = arith.subf %98, %103 : vector<8x32xf32>
    %105 = arith.mulf %104, %104 : vector<8x32xf32>
    %cst_55 = arith.constant dense<0.000000e+00> : vector<8xf32>
    %106 = vector.multi_reduction <add>, %105, %cst_55 [1] : vector<8x32xf32> to vector<8xf32>
    %107 = vector.shape_cast %106 : vector<8xf32> to vector<8x1xf32>
    %cst_56 = arith.constant 3.200000e+01 : f32
    %108 = vector.broadcast %cst_56 : f32 to vector<8x1xf32>
    %109 = arith.divf %107, %108 : vector<8x1xf32>
    %110 = vector.broadcast %102 : vector<8x1xf32> to vector<8x32xf32>
    %111 = arith.subf %98, %110 : vector<8x32xf32>
    %cst_57 = arith.constant 9.99999974E-6 : f32
    %112 = vector.broadcast %cst_57 : f32 to vector<8x1xf32>
    %113 = arith.addf %109, %112 : vector<8x1xf32>
    %114 = math.rsqrt %113 : vector<8x1xf32>
    %115 = vector.broadcast %114 : vector<8x1xf32> to vector<8x32xf32>
    %116 = arith.mulf %111, %115 : vector<8x32xf32>
    %117 = arith.mulf %116, %80 : vector<8x32xf32>
    %118 = arith.addf %117, %84 : vector<8x32xf32>
    %119 = arith.truncf %118 : vector<8x32xf32> to vector<8x32xbf16>
    %cst_58 = arith.constant dense<0.000000e+00> : vector<8x64xf32>
    %120 = tpu.matmul %119, %94, %cst_58 {dimension_numbers = #tpu.dot_dimension_numbers<[1], [0], [0], [1], [0, 0, 1, 1], [], []>} : vector<8x32xbf16>, vector<32x64xbf16>, vector<8x64xf32> -> vector<8x64xf32>
    %121 = arith.addf %120, %88 : vector<8x64xf32>
    %cst_59 = arith.constant 5.000000e-01 : f32
    %122 = vector.broadcast %cst_59 : f32 to vector<8x64xf32>
    %123 = arith.mulf %122, %121 : vector<8x64xf32>
    %cst_60 = arith.constant 4.471500e-02 : f32
    %124 = vector.broadcast %cst_60 : f32 to vector<8x64xf32>
    %125 = arith.mulf %124, %121 : vector<8x64xf32>
    %126 = arith.mulf %125, %121 : vector<8x64xf32>
    %127 = arith.mulf %126, %121 : vector<8x64xf32>
    %128 = arith.addf %121, %127 : vector<8x64xf32>
    %cst_61 = arith.constant 0.797884583 : f32
    %129 = vector.broadcast %cst_61 : f32 to vector<8x64xf32>
    %130 = arith.mulf %129, %128 : vector<8x64xf32>
    %131 = math.tanh %130 : vector<8x64xf32>
    %cst_62 = arith.constant 1.000000e+00 : f32
    %132 = vector.broadcast %cst_62 : f32 to vector<8x64xf32>
    %133 = arith.addf %132, %131 : vector<8x64xf32>
    %134 = arith.mulf %123, %133 : vector<8x64xf32>
    %135 = arith.truncf %134 : vector<8x64xf32> to vector<8x64xbf16>
    %cst_63 = arith.constant dense<0.000000e+00> : vector<8x32xf32>
    %136 = tpu.matmul %135, %96, %cst_63 {dimension_numbers = #tpu.dot_dimension_numbers<[1], [0], [0], [1], [0, 0, 1, 1], [], []>} : vector<8x64xbf16>, vector<64x32xbf16>, vector<8x32xf32> -> vector<8x32xf32>
    %137 = arith.addf %98, %136 : vector<8x32xf32>
    %138 = arith.addf %137, %92 : vector<8x32xf32>
    %cst_64 = arith.constant dense<0.000000e+00> : vector<8xf32>
    %139 = vector.multi_reduction <add>, %138, %cst_64 [1] : vector<8x32xf32> to vector<8xf32>
    %140 = vector.shape_cast %139 : vector<8xf32> to vector<8x1xf32>
    %cst_65 = arith.constant 3.200000e+01 : f32
    %141 = vector.broadcast %cst_65 : f32 to vector<8x1xf32>
    %142 = arith.divf %140, %141 : vector<8x1xf32>
    %143 = vector.broadcast %142 : vector<8x1xf32> to vector<8x32xf32>
    %144 = arith.subf %138, %143 : vector<8x32xf32>
    %145 = arith.mulf %144, %144 : vector<8x32xf32>
    %cst_66 = arith.constant dense<0.000000e+00> : vector<8xf32>
    %146 = vector.multi_reduction <add>, %145, %cst_66 [1] : vector<8x32xf32> to vector<8xf32>
    %147 = vector.shape_cast %146 : vector<8xf32> to vector<8x1xf32>
    %cst_67 = arith.constant 3.200000e+01 : f32
    %148 = vector.broadcast %cst_67 : f32 to vector<8x1xf32>
    %149 = arith.divf %147, %148 : vector<8x1xf32>
    %150 = vector.broadcast %142 : vector<8x1xf32> to vector<8x32xf32>
    %151 = arith.subf %138, %150 : vector<8x32xf32>
    %cst_68 = arith.constant 9.99999974E-6 : f32
    %152 = vector.broadcast %cst_68 : f32 to vector<8x1xf32>
    %153 = arith.addf %149, %152 : vector<8x1xf32>
    %154 = math.rsqrt %153 : vector<8x1xf32>
    %155 = vector.broadcast %154 : vector<8x1xf32> to vector<8x32xf32>
    %156 = arith.mulf %151, %155 : vector<8x32xf32>
    %157 = arith.mulf %156, %80 : vector<8x32xf32>
    %158 = arith.addf %157, %84 : vector<8x32xf32>
    %159 = arith.truncf %158 : vector<8x32xf32> to vector<8x32xbf16>
    %cst_69 = arith.constant dense<0.000000e+00> : vector<8x64xf32>
    %160 = tpu.matmul %159, %94, %cst_69 {dimension_numbers = #tpu.dot_dimension_numbers<[1], [0], [0], [1], [0, 0, 1, 1], [], []>} : vector<8x32xbf16>, vector<32x64xbf16>, vector<8x64xf32> -> vector<8x64xf32>
    %161 = arith.addf %160, %88 : vector<8x64xf32>
    %cst_70 = arith.constant 5.000000e-01 : f32
    %162 = vector.broadcast %cst_70 : f32 to vector<8x64xf32>
    %163 = arith.mulf %162, %161 : vector<8x64xf32>
    %cst_71 = arith.constant 4.471500e-02 : f32
    %164 = vector.broadcast %cst_71 : f32 to vector<8x64xf32>
    %165 = arith.mulf %164, %161 : vector<8x64xf32>
    %166 = arith.mulf %165, %161 : vector<8x64xf32>
    %167 = arith.mulf %166, %161 : vector<8x64xf32>
    %168 = arith.addf %161, %167 : vector<8x64xf32>
    %cst_72 = arith.constant 0.797884583 : f32
    %169 = vector.broadcast %cst_72 : f32 to vector<8x64xf32>
    %170 = arith.mulf %169, %168 : vector<8x64xf32>
    %171 = math.tanh %170 : vector<8x64xf32>
    %cst_73 = arith.constant 1.000000e+00 : f32
    %172 = vector.broadcast %cst_73 : f32 to vector<8x64xf32>
    %173 = arith.addf %172, %171 : vector<8x64xf32>
    %174 = arith.mulf %163, %173 : vector<8x64xf32>
    %175 = arith.truncf %174 : vector<8x64xf32> to vector<8x64xbf16>
    %cst_74 = arith.constant dense<0.000000e+00> : vector<8x32xf32>
    %176 = tpu.matmul %175, %96, %cst_74 {dimension_numbers = #tpu.dot_dimension_numbers<[1], [0], [0], [1], [0, 0, 1, 1], [], []>} : vector<8x64xbf16>, vector<64x32xbf16>, vector<8x32xf32> -> vector<8x32xf32>
    %177 = arith.addf %138, %176 : vector<8x32xf32>
    %178 = arith.addf %177, %92 : vector<8x32xf32>
    %179 = vector.shape_cast %178 : vector<8x32xf32> to vector<4x2x32xf32>
    %c0_75 = arith.constant 0 : index
    %c0_76 = arith.constant 0 : index
    %c0_77 = arith.constant 0 : index
    %180 = vector.load %arg16[%c0_75, %c0_76, %c0_77] : memref<4x2x32xf32, #tpu.memory_space<vmem>>, vector<4x2x32xf32>
    tpu.vector_store %arg16[%c0_75, %c0_76, %c0_77], %179 {strides = array<i32>} : memref<4x2x32xf32, #tpu.memory_space<vmem>>, vector<4x2x32xf32>,
    %c1_i32 = arith.constant 1 : i32
    %181 = arith.cmpi eq, %arg1, %c1_i32 : i32
    %182 = arith.extui %181 : i1 to i32
    %c0_i32_78 = arith.constant 0 : i32
    %183 = arith.cmpi ne, %182, %c0_i32_78 : i32
    scf.if %183 {
      %c3 = arith.constant 3 : index
      %c0_79 = arith.constant 0 : index
      %c0_80 = arith.constant 0 : index
      %184 = vector.load %arg16[%c3, %c0_79, %c0_80] : memref<4x2x32xf32, #tpu.memory_space<vmem>>, vector<1x2x32xf32>
      %185 = vector.shape_cast %184 : vector<1x2x32xf32> to vector<2x32xf32>
      %186 = arith.truncf %185 : vector<2x32xf32> to vector<2x32xbf16>
      %c0_81 = arith.constant 0 : index
      %c0_82 = arith.constant 0 : index
      %187 = vector.load %arg13[%c0_81, %c0_82] : memref<32x128xbf16, #tpu.memory_space<vmem>>, vector<32x128xbf16>
      %cst_83 = arith.constant dense<0.000000e+00> : vector<2x128xf32>
      %188 = tpu.matmul %186, %187, %cst_83 {dimension_numbers = #tpu.dot_dimension_numbers<[1], [0], [0], [1], [0, 0, 1, 1], [], []>} : vector<2x32xbf16>, vector<32x128xbf16>, vector<2x128xf32> -> vector<2x128xf32>
      %c0_84 = arith.constant 0 : index
      %c0_85 = arith.constant 0 : index
      %189 = vector.load %arg14[%c0_84, %c0_85] : memref<1x128xf32, #tpu.memory_space<vmem>>, vector<1x128xf32>
      %190 = vector.broadcast %189 : vector<1x128xf32> to vector<2x128xf32>
      %191 = arith.addf %188, %190 : vector<2x128xf32>
      %cst_86 = arith.constant dense<0xFF800000> : vector<2xf32>
      %192 = vector.multi_reduction <maximumf>, %191, %cst_86 [1] : vector<2x128xf32> to vector<2xf32>
      %193 = vector.shape_cast %192 : vector<2xf32> to vector<2x1xf32>
      %194 = vector.broadcast %193 : vector<2x1xf32> to vector<2x128xf32>
      %195 = arith.subf %191, %194 : vector<2x128xf32>
      %196 = math.exp %195 : vector<2x128xf32>
      %cst_87 = arith.constant dense<0.000000e+00> : vector<2xf32>
      %197 = vector.multi_reduction <add>, %196, %cst_87 [1] : vector<2x128xf32> to vector<2xf32>
      %198 = vector.shape_cast %197 : vector<2xf32> to vector<2x1xf32>
      %199 = math.log %198 : vector<2x1xf32>
      %200 = vector.broadcast %199 : vector<2x1xf32> to vector<2x128xf32>
      %201 = arith.subf %195, %200 : vector<2x128xf32>
      %c0_88 = arith.constant 0 : index
      %c0_89 = arith.constant 0 : index
      %202 = vector.load %arg15[%c0_88, %c0_89] : memref<2x128xf32, #tpu.memory_space<vmem>>, vector<2x128xf32>
      tpu.vector_store %arg15[%c0_88, %c0_89], %201 {strides = array<i32>} : memref<2x128xf32, #tpu.memory_space<vmem>>, vector<2x128xf32>,
    } else {
    }
    return
  }
  func.func @transform_0(%arg0: i32, %arg1: i32) -> (i32, i32, i32) {
    %c0_i32 = arith.constant 0 : i32
    %c0_i32_0 = arith.constant 0 : i32
    %c0_i32_1 = arith.constant 0 : i32
    return %c0_i32, %arg0, %c0_i32_0 : i32, i32, i32
  }
  func.func @transform_1(%arg0: i32, %arg1: i32) -> (i32, i32, i32) {
    %c0_i32 = arith.constant 0 : i32
    %c0_i32_0 = arith.constant 0 : i32
    %c0_i32_1 = arith.constant 0 : i32
    return %arg1, %c0_i32, %c0_i32_0 : i32, i32, i32
  }
  func.func @transform_2(%arg0: i32, %arg1: i32) -> (i32, i32, i32) {
    %c0_i32 = arith.constant 0 : i32
    %c0_i32_0 = arith.constant 0 : i32
    %c0_i32_1 = arith.constant 0 : i32
    return %arg1, %c0_i32, %c0_i32_0 : i32, i32, i32
  }
  func.func @transform_3(%arg0: i32, %arg1: i32) -> (i32, i32, i32) {
    %c0_i32 = arith.constant 0 : i32
    %c0_i32_0 = arith.constant 0 : i32
    %c0_i32_1 = arith.constant 0 : i32
    return %arg1, %c0_i32, %c0_i32_0 : i32, i32, i32
  }
  func.func @transform_4(%arg0: i32, %arg1: i32) -> (i32, i32, i32) {
    %c0_i32 = arith.constant 0 : i32
    %c0_i32_0 = arith.constant 0 : i32
    %c0_i32_1 = arith.constant 0 : i32
    return %arg1, %c0_i32, %c0_i32_0 : i32, i32, i32
  }
  func.func @transform_5(%arg0: i32, %arg1: i32) -> (i32, i32, i32) {
    %c0_i32 = arith.constant 0 : i32
    %c0_i32_0 = arith.constant 0 : i32
    %c0_i32_1 = arith.constant 0 : i32
    return %arg1, %c0_i32, %c0_i32_0 : i32, i32, i32
  }
  func.func @transform_6(%arg0: i32, %arg1: i32) -> (i32, i32, i32) {
    %c0_i32 = arith.constant 0 : i32
    %c0_i32_0 = arith.constant 0 : i32
    %c0_i32_1 = arith.constant 0 : i32
    return %arg1, %c0_i32, %c0_i32_0 : i32, i32, i32
  }
  func.func @transform_7(%arg0: i32, %arg1: i32) -> (i32, i32, i32) {
    %c0_i32 = arith.constant 0 : i32
    %c0_i32_0 = arith.constant 0 : i32
    %c0_i32_1 = arith.constant 0 : i32
    return %arg1, %c0_i32, %c0_i32_0 : i32, i32, i32
  }
  func.func @transform_8(%arg0: i32, %arg1: i32) -> (i32, i32, i32) {
    %c0_i32 = arith.constant 0 : i32
    %c0_i32_0 = arith.constant 0 : i32
    %c0_i32_1 = arith.constant 0 : i32
    return %arg1, %c0_i32, %c0_i32_0 : i32, i32, i32
  }
  func.func @transform_9(%arg0: i32, %arg1: i32) -> (i32, i32, i32) {
    %c0_i32 = arith.constant 0 : i32
    %c0_i32_0 = arith.constant 0 : i32
    %c0_i32_1 = arith.constant 0 : i32
    return %arg1, %c0_i32, %c0_i32_0 : i32, i32, i32
  }
  func.func @transform_10(%arg0: i32, %arg1: i32) -> (i32, i32, i32) {
    %c0_i32 = arith.constant 0 : i32
    %c0_i32_0 = arith.constant 0 : i32
    %c0_i32_1 = arith.constant 0 : i32
    return %arg1, %c0_i32, %c0_i32_0 : i32, i32, i32
  }
  func.func @transform_11(%arg0: i32, %arg1: i32) -> (i32, i32) {
    %c0_i32 = arith.constant 0 : i32
    %c0_i32_0 = arith.constant 0 : i32
    %c0_i32_1 = arith.constant 0 : i32
    return %c0_i32, %c0_i32_0 : i32, i32
  }
  func.func @transform_12(%arg0: i32, %arg1: i32) -> (i32, i32) {
    %c0_i32 = arith.constant 0 : i32
    %c0_i32_0 = arith.constant 0 : i32
    %c0_i32_1 = arith.constant 0 : i32
    return %c0_i32, %c0_i32_0 : i32, i32
  }
  func.func @transform_13(%arg0: i32, %arg1: i32) -> (i32, i32) {
    %c0_i32 = arith.constant 0 : i32
    %c0_i32_0 = arith.constant 0 : i32
    return %arg0, %c0_i32 : i32, i32
  }
}

</mosaic_0001>

<llo_original>
// kernel: tpu_custom_call.1
$region0: #{tpu_custom_call.1}
  #allocation0 [shape = 'u32[]', space=smem, size = 0x4, offset = 0x4, fixed_abs, tag = 'smem constant byte address 0x4 - core index']
  #allocation1 [shape = 'u32[72,128]{1,0:T(1,128)}', space=vmem, size = 0x9000, scoped, tag = 'internal scratch']
  #allocation2 [shape = 'f32[4,2,32]{2,1,0:T(2,128)}', space=vmem, size = 0x1000, scoped, tag = 'scratch operand']
  %s0 = inlined_call_operand.vmem [shape: f32[4,2,32], index: 0, kind: input, shape index: {}]
  %s1 = inlined_call_operand.vmem [shape: f32[2,1,32], index: 1, kind: input, shape index: {}]
  %s2 = inlined_call_operand.vmem [shape: f32[2,1,32], index: 2, kind: input, shape index: {}]
  %s3 = inlined_call_operand.vmem [shape: bf16[2,32,96], index: 3, kind: input, shape index: {}]
  %s4 = inlined_call_operand.vmem [shape: f32[2,1,96], index: 4, kind: input, shape index: {}]
  %s5 = inlined_call_operand.vmem [shape: f32[2,1,32], index: 5, kind: input, shape index: {}]
  %s6 = inlined_call_operand.vmem [shape: f32[2,1,32], index: 6, kind: input, shape index: {}]
  %s7 = inlined_call_operand.vmem [shape: bf16[2,32,64], index: 7, kind: input, shape index: {}]
  %s8 = inlined_call_operand.vmem [shape: f32[2,1,64], index: 8, kind: input, shape index: {}]
  %s9 = inlined_call_operand.vmem [shape: bf16[2,64,32], index: 9, kind: input, shape index: {}]
  %s10 = inlined_call_operand.vmem [shape: f32[2,1,32], index: 10, kind: input, shape index: {}]
  %s11 = inlined_call_operand.vmem [shape: bf16[32,128], index: 11, kind: input, shape index: {}]
  %s12 = inlined_call_operand.vmem [shape: f32[1,128], index: 12, kind: input, shape index: {}]
  %s13 = inlined_call_operand.hbm [shape: f32[2,128], index: 13, kind: output, shape index: {}]
  %s14 = sld [smem:[#allocation0]]
  $region93: #{tpu_custom_call.1} parent=0
    _
  %s16 = ssub.s32 1, %s14
  %s17 = scalar_select 0, %s16, %s14
  $region1: #{tpu_custom_call.1} parent=0
    #allocation3 [shape = 'u8[1024]{0}', space=vmem, size = 0x400, scoped, tag = 'output window, operand 0, single buffered']
    #allocation4 [shape = 's32[2]{0}', space=sflag, size = 0x8, scoped, tag = 'scoped memory for tpu_custom_call.1']
    %18 = vsyncpa [#allocation4], 0
    loop: start=0, step=1, limit=4
    $region2: #{tpu_custom_call.1} parent=1 // loop_pre_header
      _
    $region3: #{tpu_custom_call.1} parent=1 // loop_header
      %s20 = sphi 0, %s24
      %p21 = scmp.ge.s32.totalorder %s20, 4
      %s27 = sphi 0, %s39
      %s28 = sphi 0, %s35
      %s29 = sphi 0, %s27
      %s30 = sphi 0, %s28
      %s31 = sphi 0, %s29
      %s32 = sphi 0, %s30
      %s42 = sphi 0, %s44
      %s45 = sphi 0, %s42
      %s46 = sphi 0, %s45
      %s62 = sphi 0, %s46
      %s68 = sphi 0, %s70
      %s71 = sphi 0, %s68
      %s72 = sphi 0, %s71
      %s88 = sphi 0, %s72
      %s94 = sphi 0, %s96
      %s97 = sphi 0, %s94
      %s98 = sphi 0, %s97
      %s114 = sphi 0, %s98
      %s120 = sphi 0, %s122
      %s123 = sphi 0, %s120
      %s124 = sphi 0, %s123
      %s140 = sphi 0, %s124
      %s146 = sphi 0, %s148
      %s149 = sphi 0, %s146
      %s150 = sphi 0, %s149
      %s166 = sphi 0, %s150
      %s172 = sphi 0, %s174
      %s175 = sphi 0, %s172
      %s176 = sphi 0, %s175
      %s192 = sphi 0, %s176
      %s198 = sphi 0, %s200
      %s201 = sphi 0, %s198
      %s202 = sphi 0, %s201
      %s218 = sphi 0, %s202
      %s224 = sphi 0, %s226
      %s227 = sphi 0, %s224
      %s228 = sphi 0, %s227
      %s244 = sphi 0, %s228
      %s250 = sphi 0, %s252
      %s253 = sphi 0, %s250
      %s254 = sphi 0, %s253
      %s270 = sphi 0, %s254
      %s276 = sphi 0, %s278
      %s279 = sphi 0, %s276
      %s280 = sphi 0, %s279
      %s296 = sphi 0, %s280
      %s302 = sphi 0, %s304
      %s305 = sphi 0, %s302
      %s306 = sphi 0, %s305
      %s322 = sphi 0, %s306
      %s326 = sphi 0, %s326
      %s328 = sphi 0, %s326
      %s329 = sphi 0, %s328
      %s343 = sphi 0, %s329
      %s347 = sphi 0, %s347
      %s349 = sphi 0, %s347
      %s350 = sphi 0, %s349
      %s364 = sphi 0, %s350
      %s370 = sphi 0, %s372
      %s373 = sphi 0, %s370
      %s374 = sphi 0, %s373
      %s390 = sphi 0, %s374
    $region4: #{tpu_custom_call.1} parent=1 // loop_header_branch
      %23 = sbr.rel (%p21) target = $region8
    $region5: #{tpu_custom_call.1} parent=1 // loop_body
      %s25 = ssub.s32 %s20, 1
      %s26 = ssub.s32 %s20, 2
      %s33 = sadd.s32 1, %s28
      %p34 = scmp.ge.s32.totalorder %s33, 2
      %s35 = scalar_select %p34, 0, %s33
      %s36 = sadd.s32 1, %s27
      %s37 = scalar_select %p34, %s36, %s27
      %p38 = scmp.ge.s32.totalorder %s37, 1
      %s39 = scalar_select %p38, 0, %s37
      %s40 = ssub.s32 %s27, %s39
      %p41 = scmp.eq.s32.totalorder %s40, 0
      %s43 = sadd.s32 %s42, 1
      %s44 = scalar_select %p41, %s42, %s43
      %p47 = pneg %p41
      %p48 = scmp.eq.s32.totalorder %s20, 1
      %p49 = por %p47, %p48
      %p50 = scmp.ne.s32.totalorder %s42, %s45
      %p51 = scmp.eq.s32.totalorder %s20, 0
      %p52 = por %p50, %p51
      %p53 = scmp.ne.s32.totalorder %s42, %s45
      %p54 = scmp.eq.s32.totalorder %s25, 1
      %p55 = por %p53, %p54
      %p56 = scmp.ne.s32.totalorder %s45, %s46
      %p57 = scmp.eq.s32.totalorder %s25, 0
      %p58 = por %p56, %p57
      %p59 = scmp.ne.s32.totalorder %s45, %s46
      %p60 = scmp.eq.s32.totalorder %s26, 1
      %p61 = por %p59, %p60
      %p63 = scmp.ne.s32.totalorder %s46, %s62
      %p64 = scmp.eq.s32.totalorder %s26, 0
      %p65 = por %p63, %p64
      %s66 = ssub.s32 %s28, %s35
      %p67 = scmp.eq.s32.totalorder %s66, 0
      %s69 = sadd.s32 %s68, 1
      %s70 = scalar_select %p67, %s68, %s69
      %p73 = pneg %p67
      %p74 = scmp.eq.s32.totalorder %s20, 1
      %p75 = por %p73, %p74
      %p76 = scmp.ne.s32.totalorder %s68, %s71
      %p77 = scmp.eq.s32.totalorder %s20, 0
      %p78 = por %p76, %p77
      %p79 = scmp.ne.s32.totalorder %s68, %s71
      %p80 = scmp.eq.s32.totalorder %s25, 1
      %p81 = por %p79, %p80
      %p82 = scmp.ne.s32.totalorder %s71, %s72
      %p83 = scmp.eq.s32.totalorder %s25, 0
      %p84 = por %p82, %p83
      %p85 = scmp.ne.s32.totalorder %s71, %s72
      %p86 = scmp.eq.s32.totalorder %s26, 1
      %p87 = por %p85, %p86
      %p89 = scmp.ne.s32.totalorder %s72, %s88
      %p90 = scmp.eq.s32.totalorder %s26, 0
      %p91 = por %p89, %p90
      %s92 = ssub.s32 %s28, %s35
      %p93 = scmp.eq.s32.totalorder %s92, 0
      %s95 = sadd.s32 %s94, 1
      %s96 = scalar_select %p93, %s94, %s95
      %p99 = pneg %p93
      %p100 = scmp.eq.s32.totalorder %s20, 1
      %p101 = por %p99, %p100
      %p102 = scmp.ne.s32.totalorder %s94, %s97
      %p103 = scmp.eq.s32.totalorder %s20, 0
      %p104 = por %p102, %p103
      %p105 = scmp.ne.s32.totalorder %s94, %s97
      %p106 = scmp.eq.s32.totalorder %s25, 1
      %p107 = por %p105, %p106
      %p108 = scmp.ne.s32.totalorder %s97, %s98
      %p109 = scmp.eq.s32.totalorder %s25, 0
      %p110 = por %p108, %p109
      %p111 = scmp.ne.s32.totalorder %s97, %s98
      %p112 = scmp.eq.s32.totalorder %s26, 1
      %p113 = por %p111, %p112
      %p115 = scmp.ne.s32.totalorder %s98, %s114
      %p116 = scmp.eq.s32.totalorder %s26, 0
      %p117 = por %p115, %p116
      %s118 = ssub.s32 %s28, %s35
      %p119 = scmp.eq.s32.totalorder %s118, 0
      %s121 = sadd.s32 %s120, 1
      %s122 = scalar_select %p119, %s120, %s121
      %p125 = pneg %p119
      %p126 = scmp.eq.s32.totalorder %s20, 1
      %p127 = por %p125, %p126
      %p128 = scmp.ne.s32.totalorder %s120, %s123
      %p129 = scmp.eq.s32.totalorder %s20, 0
      %p130 = por %p128, %p129
      %p131 = scmp.ne.s32.totalorder %s120, %s123
      %p132 = scmp.eq.s32.totalorder %s25, 1
      %p133 = por %p131, %p132
      %p134 = scmp.ne.s32.totalorder %s123, %s124
      %p135 = scmp.eq.s32.totalorder %s25, 0
      %p136 = por %p134, %p135
      %p137 = scmp.ne.s32.totalorder %s123, %s124
      %p138 = scmp.eq.s32.totalorder %s26, 1
      %p139 = por %p137, %p138
      %p141 = scmp.ne.s32.totalorder %s124, %s140
      %p142 = scmp.eq.s32.totalorder %s26, 0
      %p143 = por %p141, %p142
      %s144 = ssub.s32 %s28, %s35
      %p145 = scmp.eq.s32.totalorder %s144, 0
      %s147 = sadd.s32 %s146, 1
      %s148 = scalar_select %p145, %s146, %s147
      %p151 = pneg %p145
      %p152 = scmp.eq.s32.totalorder %s20, 1
      %p153 = por %p151, %p152
      %p154 = scmp.ne.s32.totalorder %s146, %s149
      %p155 = scmp.eq.s32.totalorder %s20, 0
      %p156 = por %p154, %p155
      %p157 = scmp.ne.s32.totalorder %s146, %s149
      %p158 = scmp.eq.s32.totalorder %s25, 1
      %p159 = por %p157, %p158
      %p160 = scmp.ne.s32.totalorder %s149, %s150
      %p161 = scmp.eq.s32.totalorder %s25, 0
      %p162 = por %p160, %p161
      %p163 = scmp.ne.s32.totalorder %s149, %s150
      %p164 = scmp.eq.s32.totalorder %s26, 1
      %p165 = por %p163, %p164
      %p167 = scmp.ne.s32.totalorder %s150, %s166
      %p168 = scmp.eq.s32.totalorder %s26, 0
      %p169 = por %p167, %p168
      %s170 = ssub.s32 %s28, %s35
      %p171 = scmp.eq.s32.totalorder %s170, 0
      %s173 = sadd.s32 %s172, 1
      %s174 = scalar_select %p171, %s172, %s173
      %p177 = pneg %p171
      %p178 = scmp.eq.s32.totalorder %s20, 1
      %p179 = por %p177, %p178
      %p180 = scmp.ne.s32.totalorder %s172, %s175
      %p181 = scmp.eq.s32.totalorder %s20, 0
      %p182 = por %p180, %p181
      %p183 = scmp.ne.s32.totalorder %s172, %s175
      %p184 = scmp.eq.s32.totalorder %s25, 1
      %p185 = por %p183, %p184
      %p186 = scmp.ne.s32.totalorder %s175, %s176
      %p187 = scmp.eq.s32.totalorder %s25, 0
      %p188 = por %p186, %p187
      %p189 = scmp.ne.s32.totalorder %s175, %s176
      %p190 = scmp.eq.s32.totalorder %s26, 1
      %p191 = por %p189, %p190
      %p193 = scmp.ne.s32.totalorder %s176, %s192
      %p194 = scmp.eq.s32.totalorder %s26, 0
      %p195 = por %p193, %p194
      %s196 = ssub.s32 %s28, %s35
      %p197 = scmp.eq.s32.totalorder %s196, 0
      %s199 = sadd.s32 %s198, 1
      %s200 = scalar_select %p197, %s198, %s199
      %p203 = pneg %p197
      %p204 = scmp.eq.s32.totalorder %s20, 1
      %p205 = por %p203, %p204
      %p206 = scmp.ne.s32.totalorder %s198, %s201
      %p207 = scmp.eq.s32.totalorder %s20, 0
      %p208 = por %p206, %p207
      %p209 = scmp.ne.s32.totalorder %s198, %s201
      %p210 = scmp.eq.s32.totalorder %s25, 1
      %p211 = por %p209, %p210
      %p212 = scmp.ne.s32.totalorder %s201, %s202
      %p213 = scmp.eq.s32.totalorder %s25, 0
      %p214 = por %p212, %p213
      %p215 = scmp.ne.s32.totalorder %s201, %s202
      %p216 = scmp.eq.s32.totalorder %s26, 1
      %p217 = por %p215, %p216
      %p219 = scmp.ne.s32.totalorder %s202, %s218
      %p220 = scmp.eq.s32.totalorder %s26, 0
      %p221 = por %p219, %p220
      %s222 = ssub.s32 %s28, %s35
      %p223 = scmp.eq.s32.totalorder %s222, 0
      %s225 = sadd.s32 %s224, 1
      %s226 = scalar_select %p223, %s224, %s225
      %p229 = pneg %p223
      %p230 = scmp.eq.s32.totalorder %s20, 1
      %p231 = por %p229, %p230
      %p232 = scmp.ne.s32.totalorder %s224, %s227
      %p233 = scmp.eq.s32.totalorder %s20, 0
      %p234 = por %p232, %p233
      %p235 = scmp.ne.s32.totalorder %s224, %s227
      %p236 = scmp.eq.s32.totalorder %s25, 1
      %p237 = por %p235, %p236
      %p238 = scmp.ne.s32.totalorder %s227, %s228
      %p239 = scmp.eq.s32.totalorder %s25, 0
      %p240 = por %p238, %p239
      %p241 = scmp.ne.s32.totalorder %s227, %s228
      %p242 = scmp.eq.s32.totalorder %s26, 1
      %p243 = por %p241, %p242
      %p245 = scmp.ne.s32.totalorder %s228, %s244
      %p246 = scmp.eq.s32.totalorder %s26, 0
      %p247 = por %p245, %p246
      %s248 = ssub.s32 %s28, %s35
      %p249 = scmp.eq.s32.totalorder %s248, 0
      %s251 = sadd.s32 %s250, 1
      %s252 = scalar_select %p249, %s250, %s251
      %p255 = pneg %p249
      %p256 = scmp.eq.s32.totalorder %s20, 1
      %p257 = por %p255, %p256
      %p258 = scmp.ne.s32.totalorder %s250, %s253
      %p259 = scmp.eq.s32.totalorder %s20, 0
      %p260 = por %p258, %p259
      %p261 = scmp.ne.s32.totalorder %s250, %s253
      %p262 = scmp.eq.s32.totalorder %s25, 1
      %p263 = por %p261, %p262
      %p264 = scmp.ne.s32.totalorder %s253, %s254
      %p265 = scmp.eq.s32.totalorder %s25, 0
      %p266 = por %p264, %p265
      %p267 = scmp.ne.s32.totalorder %s253, %s254
      %p268 = scmp.eq.s32.totalorder %s26, 1
      %p269 = por %p267, %p268
      %p271 = scmp.ne.s32.totalorder %s254, %s270
      %p272 = scmp.eq.s32.totalorder %s26, 0
      %p273 = por %p271, %p272
      %s274 = ssub.s32 %s28, %s35
      %p275 = scmp.eq.s32.totalorder %s274, 0
      %s277 = sadd.s32 %s276, 1
      %s278 = scalar_select %p275, %s276, %s277
      %p281 = pneg %p275
      %p282 = scmp.eq.s32.totalorder %s20, 1
      %p283 = por %p281, %p282
      %p284 = scmp.ne.s32.totalorder %s276, %s279
      %p285 = scmp.eq.s32.totalorder %s20, 0
      %p286 = por %p284, %p285
      %p287 = scmp.ne.s32.totalorder %s276, %s279
      %p288 = scmp.eq.s32.totalorder %s25, 1
      %p289 = por %p287, %p288
      %p290 = scmp.ne.s32.totalorder %s279, %s280
      %p291 = scmp.eq.s32.totalorder %s25, 0
      %p292 = por %p290, %p291
      %p293 = scmp.ne.s32.totalorder %s279, %s280
      %p294 = scmp.eq.s32.totalorder %s26, 1
      %p295 = por %p293, %p294
      %p297 = scmp.ne.s32.totalorder %s280, %s296
      %p298 = scmp.eq.s32.totalorder %s26, 0
      %p299 = por %p297, %p298
      %s300 = ssub.s32 %s28, %s35
      %p301 = scmp.eq.s32.totalorder %s300, 0
      %s303 = sadd.s32 %s302, 1
      %s304 = scalar_select %p301, %s302, %s303
      %p307 = pneg %p301
      %p308 = scmp.eq.s32.totalorder %s20, 1
      %p309 = por %p307, %p308
      %p310 = scmp.ne.s32.totalorder %s302, %s305
      %p311 = scmp.eq.s32.totalorder %s20, 0
      %p312 = por %p310, %p311
      %p313 = scmp.ne.s32.totalorder %s302, %s305
      %p314 = scmp.eq.s32.totalorder %s25, 1
      %p315 = por %p313, %p314
      %p316 = scmp.ne.s32.totalorder %s305, %s306
      %p317 = scmp.eq.s32.totalorder %s25, 0
      %p318 = por %p316, %p317
      %p319 = scmp.ne.s32.totalorder %s305, %s306
      %p320 = scmp.eq.s32.totalorder %s26, 1
      %p321 = por %p319, %p320
      %p323 = scmp.ne.s32.totalorder %s306, %s322
      %p324 = scmp.eq.s32.totalorder %s26, 0
      %p325 = por %p323, %p324
      %s327 = sadd.s32 %s326, 1
      %p330 = scmp.eq.s32.totalorder %s20, 1
      %p331 = scmp.ne.s32.totalorder %s326, %s328
      %p332 = scmp.eq.s32.totalorder %s20, 0
      %p333 = por %p331, %p332
      %p334 = scmp.ne.s32.totalorder %s326, %s328
      %p335 = scmp.eq.s32.totalorder %s25, 1
      %p336 = por %p334, %p335
      %p337 = scmp.ne.s32.totalorder %s328, %s329
      %p338 = scmp.eq.s32.totalorder %s25, 0
      %p339 = por %p337, %p338
      %p340 = scmp.ne.s32.totalorder %s328, %s329
      %p341 = scmp.eq.s32.totalorder %s26, 1
      %p342 = por %p340, %p341
      %p344 = scmp.ne.s32.totalorder %s329, %s343
      %p345 = scmp.eq.s32.totalorder %s26, 0
      %p346 = por %p344, %p345
      %s348 = sadd.s32 %s347, 1
      %p351 = scmp.eq.s32.totalorder %s20, 1
      %p352 = scmp.ne.s32.totalorder %s347, %s349
      %p353 = scmp.eq.s32.totalorder %s20, 0
      %p354 = por %p352, %p353
      %p355 = scmp.ne.s32.totalorder %s347, %s349
      %p356 = scmp.eq.s32.totalorder %s25, 1
      %p357 = por %p355, %p356
      %p358 = scmp.ne.s32.totalorder %s349, %s350
      %p359 = scmp.eq.s32.totalorder %s25, 0
      %p360 = por %p358, %p359
      %p361 = scmp.ne.s32.totalorder %s349, %s350
      %p362 = scmp.eq.s32.totalorder %s26, 1
      %p363 = por %p361, %p362
      %p365 = scmp.ne.s32.totalorder %s350, %s364
      %p366 = scmp.eq.s32.totalorder %s26, 0
      %p367 = por %p365, %p366
      %s368 = ssub.s32 %s27, %s39
      %p369 = scmp.eq.s32.totalorder %s368, 0
      %s371 = sadd.s32 %s370, 1
      %s372 = scalar_select %p369, %s370, %s371
      %p375 = pneg %p369
      %p376 = scmp.eq.s32.totalorder %s20, 1
      %p377 = por %p375, %p376
      %p378 = scmp.ne.s32.totalorder %s370, %s373
      %p379 = scmp.eq.s32.totalorder %s20, 0
      %p380 = por %p378, %p379
      %p381 = scmp.ne.s32.totalorder %s370, %s373
      %p382 = scmp.eq.s32.totalorder %s25, 1
      %p383 = por %p381, %p382
      %p384 = scmp.ne.s32.totalorder %s373, %s374
      %p385 = scmp.eq.s32.totalorder %s25, 0
      %p386 = por %p384, %p385
      %p387 = scmp.ne.s32.totalorder %s373, %s374
      %p388 = scmp.eq.s32.totalorder %s26, 1
      %p389 = por %p387, %p388
      %p391 = scmp.ne.s32.totalorder %s374, %s390
      %p392 = scmp.eq.s32.totalorder %s26, 0
      %p393 = por %p391, %p392
      %p394 = scmp.le.s32.totalorder 1, %s20
      %p395 = scmp.lt.s32.totalorder %s20, 3
      %p396 = pnand %p394, %p395
      %p397 = pneg %p396
      // Predicated region
      $region9: #{tpu_custom_call.1} parent=5 // pred_check
        _
      $region10: #{tpu_custom_call.1} parent=5 // pred_check_branch
        %399 = sbr.rel (%p396) target = $region12
      $region11: #{tpu_custom_call.1} parent=5 // pred_region
        %s400 = ssub.s32 %s20, 1
        // Predicated region
        $region13: #{tpu_custom_call.1} parent=11 // pred_check
          %p401 = pneg %p58
        $region14: #{tpu_custom_call.1} parent=11 // pred_check_branch
          %403 = sbr.rel (%p401) target = $region16
        $region15: #{tpu_custom_call.1} parent=11 // pred_region
          %p404 = scmp.lt.s32.totalorder %s29, 0
          %s405 = scalar_select %p404, %s29, 0
          %s406 = smul.addr %s405, 2
          %s407 = scalar_lea.vmem %s0, %s406
        $region16: #{tpu_custom_call.1} parent=11 // pred_fallthru
          _
        // Predicated region
        $region17: #{tpu_custom_call.1} parent=11 // pred_check
          %p408 = pneg %p339
        $region18: #{tpu_custom_call.1} parent=11 // pred_check_branch
          %410 = sbr.rel (%p408) target = $region20
        $region19: #{tpu_custom_call.1} parent=11 // pred_region
          _
        $region20: #{tpu_custom_call.1} parent=11 // pred_fallthru
          _
        // Predicated region
        $region21: #{tpu_custom_call.1} parent=11 // pred_check
          %p411 = pneg %p360
        $region22: #{tpu_custom_call.1} parent=11 // pred_check_branch
          %413 = sbr.rel (%p411) target = $region24
        $region23: #{tpu_custom_call.1} parent=11 // pred_region
          _
        $region24: #{tpu_custom_call.1} parent=11 // pred_fallthru
          _
      $region12: #{tpu_custom_call.1} parent=5 // pred_fallthru
        _
      %p414 = scmp.lt.s32.totalorder %s20, 2
      // Predicated region
      $region25: #{tpu_custom_call.1} parent=5 // pred_check
        %p415 = pneg %p414
      $region26: #{tpu_custom_call.1} parent=5 // pred_check_branch
        %417 = sbr.rel (%p415) target = $region28
      $region27: #{tpu_custom_call.1} parent=5 // pred_region
        // Predicated region
        $region29: #{tpu_custom_call.1} parent=27 // pred_check
          %p418 = pneg %p78
        $region30: #{tpu_custom_call.1} parent=27 // pred_check_branch
          %420 = sbr.rel (%p418) target = $region32
        $region31: #{tpu_custom_call.1} parent=27 // pred_region
          %p421 = scmp.lt.s32.totalorder %s28, 1
          %s422 = scalar_select %p421, %s28, 1
          %s423 = scalar_lea.vmem %s1, %s422
        $region32: #{tpu_custom_call.1} parent=27 // pred_fallthru
          _
        // Predicated region
        $region33: #{tpu_custom_call.1} parent=27 // pred_check
          %p424 = pneg %p104
        $region34: #{tpu_custom_call.1} parent=27 // pred_check_branch
          %426 = sbr.rel (%p424) target = $region36
        $region35: #{tpu_custom_call.1} parent=27 // pred_region
          %p427 = scmp.lt.s32.totalorder %s28, 1
          %s428 = scalar_select %p427, %s28, 1
          %s429 = scalar_lea.vmem %s2, %s428
        $region36: #{tpu_custom_call.1} parent=27 // pred_fallthru
          _
        // Predicated region
        $region37: #{tpu_custom_call.1} parent=27 // pred_check
          %p430 = pneg %p130
        $region38: #{tpu_custom_call.1} parent=27 // pred_check_branch
          %432 = sbr.rel (%p430) target = $region40
        $region39: #{tpu_custom_call.1} parent=27 // pred_region
          %p433 = scmp.lt.s32.totalorder %s28, 1
          %s434 = scalar_select %p433, %s28, 1
          %s435 = smul.addr %s434, 4
          %s436 = smul.addr %s435, 4
          %s437 = scalar_lea.vmem %s3, %s436
        $region40: #{tpu_custom_call.1} parent=27 // pred_fallthru
          _
        // Predicated region
        $region41: #{tpu_custom_call.1} parent=27 // pred_check
          %p438 = pneg %p156
        $region42: #{tpu_custom_call.1} parent=27 // pred_check_branch
          %440 = sbr.rel (%p438) target = $region44
        $region43: #{tpu_custom_call.1} parent=27 // pred_region
          %p441 = scmp.lt.s32.totalorder %s28, 1
          %s442 = scalar_select %p441, %s28, 1
          %s443 = scalar_lea.vmem %s4, %s442
        $region44: #{tpu_custom_call.1} parent=27 // pred_fallthru
          _
        // Predicated region
        $region45: #{tpu_custom_call.1} parent=27 // pred_check
          %p444 = pneg %p182
        $region46: #{tpu_custom_call.1} parent=27 // pred_check_branch
          %446 = sbr.rel (%p444) target = $region48
        $region47: #{tpu_custom_call.1} parent=27 // pred_region
          %p447 = scmp.lt.s32.totalorder %s28, 1
          %s448 = scalar_select %p447, %s28, 1
          %s449 = scalar_lea.vmem %s5, %s448
        $region48: #{tpu_custom_call.1} parent=27 // pred_fallthru
          _
        // Predicated region
        $region49: #{tpu_custom_call.1} parent=27 // pred_check
          %p450 = pneg %p208
        $region50: #{tpu_custom_call.1} parent=27 // pred_check_branch
          %452 = sbr.rel (%p450) target = $region52
        $region51: #{tpu_custom_call.1} parent=27 // pred_region
          %p453 = scmp.lt.s32.totalorder %s28, 1
          %s454 = scalar_select %p453, %s28, 1
          %s455 = scalar_lea.vmem %s6, %s454
        $region52: #{tpu_custom_call.1} parent=27 // pred_fallthru
          _
        // Predicated region
        $region53: #{tpu_custom_call.1} parent=27 // pred_check
          %p456 = pneg %p234
        $region54: #{tpu_custom_call.1} parent=27 // pred_check_branch
          %458 = sbr.rel (%p456) target = $region56
        $region55: #{tpu_custom_call.1} parent=27 // pred_region
          %p459 = scmp.lt.s32.totalorder %s28, 1
          %s460 = scalar_select %p459, %s28, 1
          %s461 = smul.addr %s460, 4
          %s462 = smul.addr %s461, 4
          %s463 = scalar_lea.vmem %s7, %s462
        $region56: #{tpu_custom_call.1} parent=27 // pred_fallthru
          _
        // Predicated region
        $region57: #{tpu_custom_call.1} parent=27 // pred_check
          %p464 = pneg %p260
        $region58: #{tpu_custom_call.1} parent=27 // pred_check_branch
          %466 = sbr.rel (%p464) target = $region60
        $region59: #{tpu_custom_call.1} parent=27 // pred_region
          %p467 = scmp.lt.s32.totalorder %s28, 1
          %s468 = scalar_select %p467, %s28, 1
          %s469 = scalar_lea.vmem %s8, %s468
        $region60: #{tpu_custom_call.1} parent=27 // pred_fallthru
          _
        // Predicated region
        $region61: #{tpu_custom_call.1} parent=27 // pred_check
          %p470 = pneg %p286
        $region62: #{tpu_custom_call.1} parent=27 // pred_check_branch
          %472 = sbr.rel (%p470) target = $region64
        $region63: #{tpu_custom_call.1} parent=27 // pred_region
          %p473 = scmp.lt.s32.totalorder %s28, 1
          %s474 = scalar_select %p473, %s28, 1
          %s475 = smul.addr %s474, 8
          %s476 = smul.addr %s475, 4
          %s477 = scalar_lea.vmem %s9, %s476
        $region64: #{tpu_custom_call.1} parent=27 // pred_fallthru
          _
        // Predicated region
        $region65: #{tpu_custom_call.1} parent=27 // pred_check
          %p478 = pneg %p312
        $region66: #{tpu_custom_call.1} parent=27 // pred_check_branch
          %480 = sbr.rel (%p478) target = $region68
        $region67: #{tpu_custom_call.1} parent=27 // pred_region
          %p481 = scmp.lt.s32.totalorder %s28, 1
          %s482 = scalar_select %p481, %s28, 1
          %s483 = scalar_lea.vmem %s10, %s482
        $region68: #{tpu_custom_call.1} parent=27 // pred_fallthru
          _
      $region28: #{tpu_custom_call.1} parent=5 // pred_fallthru
        _
      %p484 = scmp.le.s32.totalorder 1, %s20
      %p485 = scmp.lt.s32.totalorder %s20, 3
      %p486 = pnand %p484, %p485
      %p487 = pneg %p486
      // Predicated region
      $region69: #{tpu_custom_call.1} parent=5 // pred_check
        _
      $region70: #{tpu_custom_call.1} parent=5 // pred_check_branch
        %489 = sbr.rel (%p486) target = $region72
      $region71: #{tpu_custom_call.1} parent=5 // pred_region
        %s490 = ssub.s32 %s20, 1
        %p491 = scmp.lt.s32.totalorder %s29, 0
        %s492 = scalar_select %p491, %s29, 0
        %s493 = smul.addr %s492, 2
        %s494 = scalar_lea.vmem %s0, %s493
        %p495 = pneg %p58
        %p496 = pneg %p55
        %p497 = scmp.lt.s32.totalorder %s30, 1
        %s498 = scalar_select %p497, %s30, 1
        %s499 = scalar_lea.vmem %s1, %s498
        %p500 = pneg %p84
        %p501 = pneg %p81
        %p502 = scmp.lt.s32.totalorder %s30, 1
        %s503 = scalar_select %p502, %s30, 1
        %s504 = scalar_lea.vmem %s2, %s503
        %p505 = pneg %p110
        %p506 = pneg %p107
        %p507 = scmp.lt.s32.totalorder %s30, 1
        %s508 = scalar_select %p507, %s30, 1
        %s509 = smul.addr %s508, 4
        %s510 = smul.addr %s509, 4
        %s511 = scalar_lea.vmem %s3, %s510
        %p512 = pneg %p136
        %p513 = pneg %p133
        %p514 = scmp.lt.s32.totalorder %s30, 1
        %s515 = scalar_select %p514, %s30, 1
        %s516 = scalar_lea.vmem %s4, %s515
        %p517 = pneg %p162
        %p518 = pneg %p159
        %p519 = scmp.lt.s32.totalorder %s30, 1
        %s520 = scalar_select %p519, %s30, 1
        %s521 = scalar_lea.vmem %s5, %s520
        %p522 = pneg %p188
        %p523 = pneg %p185
        %p524 = scmp.lt.s32.totalorder %s30, 1
        %s525 = scalar_select %p524, %s30, 1
        %s526 = scalar_lea.vmem %s6, %s525
        %p527 = pneg %p214
        %p528 = pneg %p211
        %p529 = scmp.lt.s32.totalorder %s30, 1
        %s530 = scalar_select %p529, %s30, 1
        %s531 = smul.addr %s530, 4
        %s532 = smul.addr %s531, 4
        %s533 = scalar_lea.vmem %s7, %s532
        %p534 = pneg %p240
        %p535 = pneg %p237
        %p536 = scmp.lt.s32.totalorder %s30, 1
        %s537 = scalar_select %p536, %s30, 1
        %s538 = scalar_lea.vmem %s8, %s537
        %p539 = pneg %p266
        %p540 = pneg %p263
        %p541 = scmp.lt.s32.totalorder %s30, 1
        %s542 = scalar_select %p541, %s30, 1
        %s543 = smul.addr %s542, 8
        %s544 = smul.addr %s543, 4
        %s545 = scalar_lea.vmem %s9, %s544
        %p546 = pneg %p292
        %p547 = pneg %p289
        %p548 = scmp.lt.s32.totalorder %s30, 1
        %s549 = scalar_select %p548, %s30, 1
        %s550 = scalar_lea.vmem %s10, %s549
        %p551 = pneg %p318
        %p552 = pneg %p315
        %p553 = pneg %p339
        %p554 = pneg %p336
        %p555 = pneg %p360
        %p556 = pneg %p357
        %p557 = pneg %p386
        %p558 = pneg %p383
        %p559 = scmp.lt.s32.totalorder %s29, 0
        %s560 = scalar_select %p559, %s29, 0
        %s561 = smul.addr %s560, 2
        %s562 = scalar_lea.vmem %s0, %s561
        %p563 = scmp.lt.s32.totalorder %s30, 1
        %s564 = scalar_select %p563, %s30, 1
        %s565 = scalar_lea.vmem %s1, %s564
        %p566 = scmp.lt.s32.totalorder %s30, 1
        %s567 = scalar_select %p566, %s30, 1
        %s568 = scalar_lea.vmem %s2, %s567
        %p569 = scmp.lt.s32.totalorder %s30, 1
        %s570 = scalar_select %p569, %s30, 1
        %s571 = smul.addr %s570, 4
        %s572 = smul.addr %s571, 4
        %s573 = scalar_lea.vmem %s3, %s572
        %p574 = scmp.lt.s32.totalorder %s30, 1
        %s575 = scalar_select %p574, %s30, 1
        %s576 = scalar_lea.vmem %s4, %s575
        %p577 = scmp.lt.s32.totalorder %s30, 1
        %s578 = scalar_select %p577, %s30, 1
        %s579 = scalar_lea.vmem %s5, %s578
        %p580 = scmp.lt.s32.totalorder %s30, 1
        %s581 = scalar_select %p580, %s30, 1
        %s582 = scalar_lea.vmem %s6, %s581
        %p583 = scmp.lt.s32.totalorder %s30, 1
        %s584 = scalar_select %p583, %s30, 1
        %s585 = smul.addr %s584, 4
        %s586 = smul.addr %s585, 4
        %s587 = scalar_lea.vmem %s7, %s586
        %p588 = scmp.lt.s32.totalorder %s30, 1
        %s589 = scalar_select %p588, %s30, 1
        %s590 = scalar_lea.vmem %s8, %s589
        %p591 = scmp.lt.s32.totalorder %s30, 1
        %s592 = scalar_select %p591, %s30, 1
        %s593 = smul.addr %s592, 8
        %s594 = smul.addr %s593, 4
        %s595 = scalar_lea.vmem %s9, %s594
        %p596 = scmp.lt.s32.totalorder %s30, 1
        %s597 = scalar_select %p596, %s30, 1
        %s598 = scalar_lea.vmem %s10, %s597
        %p600 = scmp.eq.s32.totalorder %s30, 0
        // Predicated region
        $region73: #{tpu_custom_call.1} parent=71 // pred_check
          %p601 = pneg %p600
        $region74: #{tpu_custom_call.1} parent=71 // pred_check_branch
          %603 = sbr.rel (%p601) target = $region76
        $region75: #{tpu_custom_call.1} parent=71 // pred_region
          %v604 = vld [vmem:[%s562] sm:$0x3]
          %v605 = vld [vmem:[%s562 + $0x2] sm:$0x3]
          %v606 = vld [vmem:[%s562 + $0x4] sm:$0x3]
          %v607 = vld [vmem:[%s562 + $0x6] sm:$0x3]
          %vm608 = vcmask 254976
          %609 = vst.msk [vmem:[#allocation2] sm:$0x3] %vm608, %v604
          %610 = vst.msk [vmem:[#allocation2 + $0x2] sm:$0x3] %vm608, %v605
          %611 = vst.msk [vmem:[#allocation2 + $0x4] sm:$0x3] %vm608, %v606
          %612 = vst.msk [vmem:[#allocation2 + $0x6] sm:$0x3] %vm608, %v607
        $region76: #{tpu_custom_call.1} parent=71 // pred_fallthru
          _
        %v613 = vld [vmem:[#allocation2] sm:$0x3]
        %v614 = vld [vmem:[#allocation2 + $0x2] sm:$0x3]
        %v615 = vld [vmem:[#allocation2 + $0x4] sm:$0x3]
        %v616 = vld [vmem:[#allocation2 + $0x6] sm:$0x3]
        %v617 = vld [vmem:[%s565] sm:$0x1]
        %v618 = vld [vmem:[%s568] sm:$0x1]
        %623 = vst [vmem:[#allocation1] ss:$4 sm:$0xff] %v613
        %s624 = scalar_lea.vmem [#allocation1], 1
        %625 = vst [vmem:[%s624] ss:$4 sm:$0xff] %v614
        %s626 = scalar_lea.vmem [#allocation1], 2
        %627 = vst [vmem:[%s626] ss:$4 sm:$0xff] %v615
        %s628 = scalar_lea.vmem [#allocation1], 3
        %629 = vst [vmem:[%s628] ss:$4 sm:$0xff] %v616
        %v630 = vld.sshfl [vmem:[#allocation1] sm:$0xff pattern:$0x73625140]
        %vm632 = vcmask 261120
        %v633 = vsel %vm632, %v630, 0.0
        %634 = vadd.xlane.f32.xlu0 %v633
        %v635 = vpop.xlane.xlu0 %634
        %v636 = vrcp.pop 32.0
        %v637 = vmul.f32 32.0, %v636
        %v638 = vsub.f32 1.0, %v637
        %v639 = vmul.f32 %v636, %v638
        %v640 = vadd.f32 %v636, %v639
        %vm641 = vweird.f32 %v636
        %v642 = vsel %vm641, %v636, %v640
        %v643 = vmul.f32 %v635, %v642
        %v646 = vunpack.c.l.s4 269488144
        %v647 = vunpack.c.0.s8 %v646
        %v648 = vperm.slane %v643, %v647
        %v650 = vunpack.c.l.s4 842150450
        %v651 = vunpack.c.0.s8 %v650
        %v652 = vperm.slane %v643, %v651
        %v654 = vunpack.c.l.s4 1414812756
        %v655 = vunpack.c.0.s8 %v654
        %v656 = vperm.slane %v643, %v655
        %v658 = vunpack.c.l.s4 1987475062
        %v659 = vunpack.c.0.s8 %v658
        %v660 = vperm.slane %v643, %v659
        %v665 = vsub.f32 %v613, %v648
        %v666 = vsub.f32 %v614, %v652
        %v667 = vsub.f32 %v615, %v656
        %v668 = vsub.f32 %v616, %v660
        %v669 = vmul.f32 %v665, %v665
        %v670 = vmul.f32 %v666, %v666
        %v671 = vmul.f32 %v667, %v667
        %v672 = vmul.f32 %v668, %v668
        %677 = vst [vmem:[#allocation1] ss:$4 sm:$0xff] %v669
        %s678 = scalar_lea.vmem [#allocation1], 1
        %679 = vst [vmem:[%s678] ss:$4 sm:$0xff] %v670
        %s680 = scalar_lea.vmem [#allocation1], 2
        %681 = vst [vmem:[%s680] ss:$4 sm:$0xff] %v671
        %s682 = scalar_lea.vmem [#allocation1], 3
        %683 = vst [vmem:[%s682] ss:$4 sm:$0xff] %v672
        %v684 = vld.sshfl [vmem:[#allocation1] sm:$0xff pattern:$0x73625140]
        %v686 = vsel %vm632, %v684, 0.0
        %687 = vadd.xlane.f32.xlu0 %v686
        %v688 = vpop.xlane.xlu0 %687
        %v689 = vmul.f32 %v688, %v642
        %v690 = vadd.f32 %v689, 1e-05
        %v691 = vrsqrt.pop %v690
        %v692 = vmul.f32 %v691, %v690
        %v693 = vmul.f32 %v692, %v691
        %v694 = vmul.f32 0.5, %v693
        %v695 = vsub.f32 1.5, %v694
        %v696 = vmul.f32 %v691, %v695
        %vm697 = vweird.f32 %v690
        %vm698 = vweird.f32 %v691
        %vm699 = vmor %vm697, %vm698
        %v700 = vsel %vm699, %v691, %v696
        %v703 = vunpack.c.l.s4 269488144
        %v704 = vunpack.c.0.s8 %v703
        %v705 = vperm.slane %v700, %v704
        %v707 = vunpack.c.l.s4 842150450
        %v708 = vunpack.c.0.s8 %v707
        %v709 = vperm.slane %v700, %v708
        %v711 = vunpack.c.l.s4 1414812756
        %v712 = vunpack.c.0.s8 %v711
        %v713 = vperm.slane %v700, %v712
        %v715 = vunpack.c.l.s4 1987475062
        %v716 = vunpack.c.0.s8 %v715
        %v717 = vperm.slane %v700, %v716
        %v722 = vmul.f32 %v665, %v705
        %v723 = vmul.f32 %v666, %v709
        %v724 = vmul.f32 %v667, %v713
        %v725 = vmul.f32 %v668, %v717
        %v727 = vperm.slane %v617, 0
        %v729 = vrot.slane %v727, 2
        %v730 = vrot.slane %v727, 4
        %v731 = vrot.slane %v727, 6
        %v735 = vmul.f32 %v722, %v727
        %v736 = vmul.f32 %v723, %v729
        %v737 = vmul.f32 %v724, %v730
        %v738 = vmul.f32 %v725, %v731
        %v740 = vperm.slane %v618, 0
        %v742 = vrot.slane %v740, 2
        %v743 = vrot.slane %v740, 4
        %v744 = vrot.slane %v740, 6
        %v748 = vadd.f32 %v735, %v740
        %v749 = vadd.f32 %v736, %v742
        %v750 = vadd.f32 %v737, %v743
        %v751 = vadd.f32 %v738, %v744
        %756 = vst [vmem:[#allocation1] ss:$4 sm:$0xff] %v748
        %s757 = scalar_lea.vmem [#allocation1], 1
        %758 = vst [vmem:[%s757] ss:$4 sm:$0xff] %v749
        %s759 = scalar_lea.vmem [#allocation1], 2
        %760 = vst [vmem:[%s759] ss:$4 sm:$0xff] %v750
        %s761 = scalar_lea.vmem [#allocation1], 3
        %762 = vst [vmem:[%s761] ss:$4 sm:$0xff] %v751
        %v763 = vld.sshfl [vmem:[#allocation1] sm:$0xff pattern:$0x73625140]
        %v765 = vpack.c.bf16 %v763, %v763
        %v766 = vld [vmem:[%s573] sm:$0xf]
        %v767 = vld [vmem:[%s573 + $0x4] sm:$0xf]
        %v768 = vld [vmem:[%s573 + $0x8] sm:$0xf]
        %v769 = vld [vmem:[%s573 + $0xc] sm:$0xf]
        %v770 = vld [vmem:[%s576] sm:$0x1]
        %v772 = vperm.slane %v770, 0
        %v778 = vunpack.c.l.b16 %v766
        %v779 = vunpack.c.l.b16 %v767
        %v780 = vunpack.c.l.b16 %v768
        %v781 = vunpack.c.l.b16 %v769
        %v782 = vpack.c.b16 %v779, %v778
        %v783 = vpack.c.b16 %v781, %v780
        %v787 = vsel %vm632, %v765, 0
        %789 = vmatpush.bf16.msra.mxu0 0
        %790 = vmatpush.bf16.msra.mxu0 0
        %791 = vmatpush.bf16.msra.mxu0 0
        %792 = vmatpush.bf16.msra.mxu0 0
        %793 = vmatpush.bf16.msra.mxu0 0
        %794 = vmatpush.bf16.msra.mxu0 0
        %795 = vmatpush.bf16.msra.mxu0 %v783
        %796 = vmatpush.bf16.msra.mxu0 %v782
        %797 = vmatmul.bf16.gmra.mxu0 %v787
        %v798 = vpop.f32.mrf.mxu0
        %v799 = vadd.f32 %v772, %v798
        %v800 = vpop.f32.mrf.mxu0
        %801 = vdwg.mxu0
        %v802 = vmax.f32 %v799, 0.0
        %804 = vrot.lane.b32.xlu0 %v802, 112
        %v805 = vpop.permute.xlu0 %804
        %v807 = vrot.slane %v802, 4
        %vm808 = vcmask 1047556
        %v809 = vsel %vm808, 0.0, %v807
        %v811 = vunpack.c.l.s4 1983009808
        %v812 = vunpack.c.0.s8 %v811
        %v813 = vperm.slane %v802, %v812
        %v815 = vunpack.c.l.s4 1983009808
        %v816 = vunpack.c.0.s8 %v815
        %v817 = vperm.slane %v809, %v816
        %v818 = vrot.slane %v805, 4
        %v819 = vsel %vm808, 0.0, %v818
        %v821 = vunpack.c.l.s4 1983009808
        %v822 = vunpack.c.0.s8 %v821
        %v823 = vperm.slane %v805, %v822
        %v825 = vunpack.c.l.s4 1983009808
        %v826 = vunpack.c.0.s8 %v825
        %v827 = vperm.slane %v819, %v826
        %v828 = vrot.slane %v823, 4
        %v829 = vsel %vm808, %v828, %v813
        %v830 = vrot.slane %v813, 4
        %v831 = vsel %vm808, %v823, %v830
        %v833 = vunpack.c.l.s4 1934713408
        %v834 = vunpack.c.0.s8 %v833
        %v835 = vperm.slane %v829, %v834
        %v837 = vunpack.c.l.s4 1934713408
        %v838 = vunpack.c.0.s8 %v837
        %v839 = vperm.slane %v831, %v838
        %v840 = vrot.slane %v827, 4
        %v841 = vsel %vm808, %v840, %v817
        %v842 = vrot.slane %v817, 4
        %v843 = vsel %vm808, %v827, %v842
        %v845 = vunpack.c.l.s4 1934713408
        %v846 = vunpack.c.0.s8 %v845
        %v847 = vperm.slane %v841, %v846
        %v849 = vunpack.c.l.s4 1934713408
        %v850 = vunpack.c.0.s8 %v849
        %v851 = vperm.slane %v843, %v850
        %v852 = vrot.slane %v835, 4
        %v853 = vsel %vm808, 0.0, %v852
        %v854 = vrot.slane %v839, 4
        %v855 = vsel %vm808, 0.0, %v854
        %v856 = vrot.slane %v847, 4
        %v857 = vsel %vm808, 0.0, %v856
        %v858 = vrot.slane %v851, 4
        %v859 = vsel %vm808, 0.0, %v858
        %v860 = vsel %vm808, %v856, %v835
        %v862 = vunpack.c.l.s4 1983009808
        %v863 = vunpack.c.0.s8 %v862
        %v864 = vperm.slane %v860, %v863
        %v865 = vsel %vm808, %v858, %v839
        %v867 = vunpack.c.l.s4 1983009808
        %v868 = vunpack.c.0.s8 %v867
        %v869 = vperm.slane %v865, %v868
        %v870 = vrot.slane %v869, 4
        %v871 = vsel %vm808, %v870, %v864
        %v873 = vunpack.c.l.s4 1934713408
        %v874 = vunpack.c.0.s8 %v873
        %v875 = vperm.slane %v871, %v874
        %v876 = vrot.slane %v875, 4
        %v877 = vsel %vm808, 0.0, %v876
        %v878 = vrot.slane %v857, 4
        %v879 = vsel %vm808, %v878, %v853
        %v881 = vunpack.c.l.s4 1983009808
        %v882 = vunpack.c.0.s8 %v881
        %v883 = vperm.slane %v879, %v882
        %v884 = vrot.slane %v859, 4
        %v885 = vsel %vm808, %v884, %v855
        %v887 = vunpack.c.l.s4 1983009808
        %v888 = vunpack.c.0.s8 %v887
        %v889 = vperm.slane %v885, %v888
        %v890 = vrot.slane %v889, 4
        %v891 = vsel %vm808, %v890, %v883
        %v893 = vunpack.c.l.s4 1934713408
        %v894 = vunpack.c.0.s8 %v893
        %v895 = vperm.slane %v891, %v894
        %v896 = vrot.slane %v895, 4
        %v897 = vsel %vm808, 0.0, %v896
        %898 = vrot.lane.b32.xlu0 %v802, 96
        %v899 = vpop.permute.xlu0 %898
        %900 = vrot.lane.b32.xlu0 %v805, 96
        %v901 = vpop.permute.xlu0 %900
        %v904 = vrot.slane %v899, 4
        %v905 = vsel %vm808, 0.0, %v904
        %v907 = vunpack.c.l.s4 1983009808
        %v908 = vunpack.c.0.s8 %v907
        %v909 = vperm.slane %v899, %v908
        %v911 = vunpack.c.l.s4 1983009808
        %v912 = vunpack.c.0.s8 %v911
        %v913 = vperm.slane %v905, %v912
        %v914 = vrot.slane %v901, 4
        %v915 = vsel %vm808, 0.0, %v914
        %v917 = vunpack.c.l.s4 1983009808
        %v918 = vunpack.c.0.s8 %v917
        %v919 = vperm.slane %v901, %v918
        %v921 = vunpack.c.l.s4 1983009808
        %v922 = vunpack.c.0.s8 %v921
        %v923 = vperm.slane %v915, %v922
        %v924 = vrot.slane %v919, 4
        %v925 = vsel %vm808, %v924, %v909
        %v926 = vrot.slane %v909, 4
        %v927 = vsel %vm808, %v919, %v926
        %v929 = vunpack.c.l.s4 1934713408
        %v930 = vunpack.c.0.s8 %v929
        %v931 = vperm.slane %v925, %v930
        %v933 = vunpack.c.l.s4 1934713408
        %v934 = vunpack.c.0.s8 %v933
        %v935 = vperm.slane %v927, %v934
        %v936 = vrot.slane %v923, 4
        %v937 = vsel %vm808, %v936, %v913
        %v938 = vrot.slane %v913, 4
        %v939 = vsel %vm808, %v923, %v938
        %v941 = vunpack.c.l.s4 1934713408
        %v942 = vunpack.c.0.s8 %v941
        %v943 = vperm.slane %v937, %v942
        %v945 = vunpack.c.l.s4 1934713408
        %v946 = vunpack.c.0.s8 %v945
        %v947 = vperm.slane %v939, %v946
        %v948 = vrot.slane %v931, 4
        %v949 = vsel %vm808, 0.0, %v948
        %v950 = vrot.slane %v935, 4
        %v951 = vsel %vm808, 0.0, %v950
        %v952 = vrot.slane %v943, 4
        %v953 = vsel %vm808, 0.0, %v952
        %v954 = vrot.slane %v947, 4
        %v955 = vsel %vm808, 0.0, %v954
        %v956 = vsel %vm808, %v952, %v931
        %v958 = vunpack.c.l.s4 1983009808
        %v959 = vunpack.c.0.s8 %v958
        %v960 = vperm.slane %v956, %v959
        %v961 = vsel %vm808, %v954, %v935
        %v963 = vunpack.c.l.s4 1983009808
        %v964 = vunpack.c.0.s8 %v963
        %v965 = vperm.slane %v961, %v964
        %v966 = vrot.slane %v965, 4
        %v967 = vsel %vm808, %v966, %v960
        %v969 = vunpack.c.l.s4 1934713408
        %v970 = vunpack.c.0.s8 %v969
        %v971 = vperm.slane %v967, %v970
        %v972 = vrot.slane %v971, 4
        %v973 = vsel %vm808, 0.0, %v972
        %v974 = vrot.slane %v953, 4
        %v975 = vsel %vm808, %v974, %v949
        %v977 = vunpack.c.l.s4 1983009808
        %v978 = vunpack.c.0.s8 %v977
        %v979 = vperm.slane %v975, %v978
        %v980 = vrot.slane %v955, 4
        %v981 = vsel %vm808, %v980, %v951
        %v983 = vunpack.c.l.s4 1983009808
        %v984 = vunpack.c.0.s8 %v983
        %v985 = vperm.slane %v981, %v984
        %v986 = vrot.slane %v985, 4
        %v987 = vsel %vm808, %v986, %v979
        %v989 = vunpack.c.l.s4 1934713408
        %v990 = vunpack.c.0.s8 %v989
        %v991 = vperm.slane %v987, %v990
        %v992 = vrot.slane %v991, 4
        %v993 = vsel %vm808, 0.0, %v992
        %995 = vrot.lane.b32.xlu0 %v799, 112
        %v996 = vpop.permute.xlu0 %995
        %997 = vrot.lane.b32.xlu0 %v799, 64
        %v998 = vpop.permute.xlu0 %997
        %999 = vrot.lane.b32.xlu0 %v996, 64
        %v1000 = vpop.permute.xlu0 %999
        %v1003 = vrot.slane %v998, 4
        %v1004 = vsel %vm808, 0.0, %v1003
        %v1006 = vunpack.c.l.s4 1983009808
        %v1007 = vunpack.c.0.s8 %v1006
        %v1008 = vperm.slane %v998, %v1007
        %v1010 = vunpack.c.l.s4 1983009808
        %v1011 = vunpack.c.0.s8 %v1010
        %v1012 = vperm.slane %v1004, %v1011
        %v1013 = vrot.slane %v1000, 4
        %v1014 = vsel %vm808, 0.0, %v1013
        %v1016 = vunpack.c.l.s4 1983009808
        %v1017 = vunpack.c.0.s8 %v1016
        %v1018 = vperm.slane %v1000, %v1017
        %v1020 = vunpack.c.l.s4 1983009808
        %v1021 = vunpack.c.0.s8 %v1020
        %v1022 = vperm.slane %v1014, %v1021
        %v1023 = vrot.slane %v1018, 4
        %v1024 = vsel %vm808, %v1023, %v1008
        %v1025 = vrot.slane %v1008, 4
        %v1026 = vsel %vm808, %v1018, %v1025
        %v1028 = vunpack.c.l.s4 1934713408
        %v1029 = vunpack.c.0.s8 %v1028
        %v1030 = vperm.slane %v1024, %v1029
        %v1032 = vunpack.c.l.s4 1934713408
        %v1033 = vunpack.c.0.s8 %v1032
        %v1034 = vperm.slane %v1026, %v1033
        %v1035 = vrot.slane %v1022, 4
        %v1036 = vsel %vm808, %v1035, %v1012
        %v1037 = vrot.slane %v1012, 4
        %v1038 = vsel %vm808, %v1022, %v1037
        %v1040 = vunpack.c.l.s4 1934713408
        %v1041 = vunpack.c.0.s8 %v1040
        %v1042 = vperm.slane %v1036, %v1041
        %v1044 = vunpack.c.l.s4 1934713408
        %v1045 = vunpack.c.0.s8 %v1044
        %v1046 = vperm.slane %v1038, %v1045
        %v1047 = vrot.slane %v1030, 4
        %v1048 = vsel %vm808, 0.0, %v1047
        %v1049 = vrot.slane %v1034, 4
        %v1050 = vsel %vm808, 0.0, %v1049
        %v1051 = vrot.slane %v1042, 4
        %v1052 = vsel %vm808, 0.0, %v1051
        %v1053 = vrot.slane %v1046, 4
        %v1054 = vsel %vm808, 0.0, %v1053
        %v1055 = vsel %vm808, %v1051, %v1030
        %v1057 = vunpack.c.l.s4 1983009808
        %v1058 = vunpack.c.0.s8 %v1057
        %v1059 = vperm.slane %v1055, %v1058
        %v1060 = vsel %vm808, %v1053, %v1034
        %v1062 = vunpack.c.l.s4 1983009808
        %v1063 = vunpack.c.0.s8 %v1062
        %v1064 = vperm.slane %v1060, %v1063
        %v1065 = vrot.slane %v1064, 4
        %v1066 = vsel %vm808, %v1065, %v1059
        %v1068 = vunpack.c.l.s4 1934713408
        %v1069 = vunpack.c.0.s8 %v1068
        %v1070 = vperm.slane %v1066, %v1069
        %v1071 = vrot.slane %v1070, 4
        %v1072 = vsel %vm808, 0.0, %v1071
        %v1073 = vrot.slane %v1052, 4
        %v1074 = vsel %vm808, %v1073, %v1048
        %v1076 = vunpack.c.l.s4 1983009808
        %v1077 = vunpack.c.0.s8 %v1076
        %v1078 = vperm.slane %v1074, %v1077
        %v1079 = vrot.slane %v1054, 4
        %v1080 = vsel %vm808, %v1079, %v1050
        %v1082 = vunpack.c.l.s4 1983009808
        %v1083 = vunpack.c.0.s8 %v1082
        %v1084 = vperm.slane %v1080, %v1083
        %v1085 = vrot.slane %v1084, 4
        %v1086 = vsel %vm808, %v1085, %v1078
        %v1088 = vunpack.c.l.s4 1934713408
        %v1089 = vunpack.c.0.s8 %v1088
        %v1090 = vperm.slane %v1086, %v1089
        %v1091 = vrot.slane %v1090, 4
        %v1092 = vsel %vm808, 0.0, %v1091
        %v1093 = vlaneseq
        %v1094 = vshrl.u32 %v1093, 7
        %v1095 = vlaneseq
        %v1096 = vand.u32 %v1095, 127
        %vm1097 = vcmp.le.s32.totalorder %v1096, %v1094
        %v1098 = vsel %vm1097, 1, 0
        %v1099 = vcvt.s32.f32 %v1098
        %vm1100 = vcmask 130048
        %v1102 = vsel %vm1100, %v875, 0
        %v1105 = vsel %vm1100, %v971, 0
        %1107 = vmatpush.xpose.msra.mxu0 0.0
        %1108 = vmatpush.xpose.msra.mxu0 0.0
        %1109 = vmatpush.xpose.msra.mxu0 0.0
        %1110 = vmatpush.xpose.msra.mxu0 0.0
        %1111 = vmatpush.xpose.msra.mxu0 0.0
        %1112 = vmatpush.xpose.msra.mxu0 0.0
        %1113 = vmatpush.xpose.msra.mxu0 0.0
        %1114 = vmatpush.xpose.msra.mxu0 0.0
        %1115 = vmatpush.xpose.msra.mxu0 0.0
        %1116 = vmatpush.xpose.msra.mxu0 0.0
        %1117 = vmatpush.xpose.msra.mxu0 0.0
        %1118 = vmatpush.xpose.msra.mxu0 0.0
        %1119 = vmatpush.xpose.msra.mxu0 0.0
        %1120 = vmatpush.xpose.msra.mxu0 0.0
        %1121 = vmatpush.xpose.msra.mxu0 0.0
        %1122 = vmatpush.xpose.msra.mxu0 %v1105
        %1123 = vmatmul.f32.gmra.mxu0 %v1102
        %v1124 = vpop.f32.mrf.mxu0
        %v1125 = vadd.f32 0.0, %v1124
        %1126 = vdwg.mxu0
        %v1128 = vsel %vm1100, %v877, 0
        %v1131 = vsel %vm1100, %v973, 0
        %1133 = vmatpush.xpose.msra.mxu0 0.0
        %1134 = vmatpush.xpose.msra.mxu0 0.0
        %1135 = vmatpush.xpose.msra.mxu0 0.0
        %1136 = vmatpush.xpose.msra.mxu0 0.0
        %1137 = vmatpush.xpose.msra.mxu0 0.0
        %1138 = vmatpush.xpose.msra.mxu0 0.0
        %1139 = vmatpush.xpose.msra.mxu0 0.0
        %1140 = vmatpush.xpose.msra.mxu0 0.0
        %1141 = vmatpush.xpose.msra.mxu0 0.0
        %1142 = vmatpush.xpose.msra.mxu0 0.0
        %1143 = vmatpush.xpose.msra.mxu0 0.0
        %1144 = vmatpush.xpose.msra.mxu0 0.0
        %1145 = vmatpush.xpose.msra.mxu0 0.0
        %1146 = vmatpush.xpose.msra.mxu0 0.0
        %1147 = vmatpush.xpose.msra.mxu0 0.0
        %1148 = vmatpush.xpose.msra.mxu0 %v1131
        %1149 = vmatmul.f32.gmra.mxu0 %v1128
        %v1150 = vpop.f32.mrf.mxu0
        %v1151 = vadd.f32 0.0, %v1150
        %1152 = vdwg.mxu0
        %v1154 = vsel %vm1100, %v895, 0
        %v1157 = vsel %vm1100, %v991, 0
        %1159 = vmatpush.xpose.msra.mxu0 0.0
        %1160 = vmatpush.xpose.msra.mxu0 0.0
        %1161 = vmatpush.xpose.msra.mxu0 0.0
        %1162 = vmatpush.xpose.msra.mxu0 0.0
        %1163 = vmatpush.xpose.msra.mxu0 0.0
        %1164 = vmatpush.xpose.msra.mxu0 0.0
        %1165 = vmatpush.xpose.msra.mxu0 0.0
        %1166 = vmatpush.xpose.msra.mxu0 0.0
        %1167 = vmatpush.xpose.msra.mxu0 0.0
        %1168 = vmatpush.xpose.msra.mxu0 0.0
        %1169 = vmatpush.xpose.msra.mxu0 0.0
        %1170 = vmatpush.xpose.msra.mxu0 0.0
        %1171 = vmatpush.xpose.msra.mxu0 0.0
        %1172 = vmatpush.xpose.msra.mxu0 0.0
        %1173 = vmatpush.xpose.msra.mxu0 0.0
        %1174 = vmatpush.xpose.msra.mxu0 %v1157
        %1175 = vmatmul.f32.gmra.mxu0 %v1154
        %v1176 = vpop.f32.mrf.mxu0
        %v1177 = vadd.f32 0.0, %v1176
        %1178 = vdwg.mxu0
        %v1180 = vsel %vm1100, %v897, 0
        %v1183 = vsel %vm1100, %v993, 0
        %1185 = vmatpush.xpose.msra.mxu0 0.0
        %1186 = vmatpush.xpose.msra.mxu0 0.0
        %1187 = vmatpush.xpose.msra.mxu0 0.0
        %1188 = vmatpush.xpose.msra.mxu0 0.0
        %1189 = vmatpush.xpose.msra.mxu0 0.0
        %1190 = vmatpush.xpose.msra.mxu0 0.0
        %1191 = vmatpush.xpose.msra.mxu0 0.0
        %1192 = vmatpush.xpose.msra.mxu0 0.0
        %1193 = vmatpush.xpose.msra.mxu0 0.0
        %1194 = vmatpush.xpose.msra.mxu0 0.0
        %1195 = vmatpush.xpose.msra.mxu0 0.0
        %1196 = vmatpush.xpose.msra.mxu0 0.0
        %1197 = vmatpush.xpose.msra.mxu0 0.0
        %1198 = vmatpush.xpose.msra.mxu0 0.0
        %1199 = vmatpush.xpose.msra.mxu0 0.0
        %1200 = vmatpush.xpose.msra.mxu0 %v1183
        %1201 = vmatmul.f32.gmra.mxu0 %v1180
        %v1202 = vpop.f32.mrf.mxu0
        %v1203 = vadd.f32 0.0, %v1202
        %1204 = vdwg.mxu0
        %v1205 = vmul.f32 %v1125, %v1099
        %v1206 = vmul.f32 %v1151, %v1099
        %v1207 = vmul.f32 %v1177, %v1099
        %v1208 = vmul.f32 %v1203, %v1099
        %vm1209 = vcmask 31744
        %v1211 = vsel %vm1209, %v1205, 0
        %vm1213 = vcmask 1043456
        %v1215 = vsel %vm1213, %v1070, 0
        %1217 = vmatpush.msra.mxu0 0.0
        %1218 = vmatpush.msra.mxu0 0.0
        %1219 = vmatpush.msra.mxu0 0.0
        %1220 = vmatpush.msra.mxu0 0.0
        %1221 = vmatpush.msra.mxu0 0.0
        %1222 = vmatpush.msra.mxu0 0.0
        %1223 = vmatpush.msra.mxu0 0.0
        %1224 = vmatpush.msra.mxu0 0.0
        %1225 = vmatpush.msra.mxu0 0.0
        %1226 = vmatpush.msra.mxu0 0.0
        %1227 = vmatpush.msra.mxu0 0.0
        %1228 = vmatpush.msra.mxu0 0.0
        %1229 = vmatpush.msra.mxu0 0.0
        %1230 = vmatpush.msra.mxu0 0.0
        %1231 = vmatpush.msra.mxu0 0.0
        %1232 = vmatpush.msra.mxu0 %v1215
        %1233 = vmatmul.f32.gmra.mxu0 %v1211
        %v1234 = vpop.f32.mrf.mxu0
        %v1235 = vadd.f32 0.0, %v1234
        %1236 = vdwg.mxu0
        %v1238 = vsel %vm1209, %v1206, 0
        %v1241 = vsel %vm1213, %v1072, 0
        %1243 = vmatpush.msra.mxu0 0.0
        %1244 = vmatpush.msra.mxu0 0.0
        %1245 = vmatpush.msra.mxu0 0.0
        %1246 = vmatpush.msra.mxu0 0.0
        %1247 = vmatpush.msra.mxu0 0.0
        %1248 = vmatpush.msra.mxu0 0.0
        %1249 = vmatpush.msra.mxu0 0.0
        %1250 = vmatpush.msra.mxu0 0.0
        %1251 = vmatpush.msra.mxu0 0.0
        %1252 = vmatpush.msra.mxu0 0.0
        %1253 = vmatpush.msra.mxu0 0.0
        %1254 = vmatpush.msra.mxu0 0.0
        %1255 = vmatpush.msra.mxu0 0.0
        %1256 = vmatpush.msra.mxu0 0.0
        %1257 = vmatpush.msra.mxu0 0.0
        %1258 = vmatpush.msra.mxu0 %v1241
        %1259 = vmatmul.f32.gmra.mxu0 %v1238
        %v1260 = vpop.f32.mrf.mxu0
        %v1261 = vadd.f32 0.0, %v1260
        %1262 = vdwg.mxu0
        %v1264 = vsel %vm1209, %v1207, 0
        %v1267 = vsel %vm1213, %v1090, 0
        %1269 = vmatpush.msra.mxu0 0.0
        %1270 = vmatpush.msra.mxu0 0.0
        %1271 = vmatpush.msra.mxu0 0.0
        %1272 = vmatpush.msra.mxu0 0.0
        %1273 = vmatpush.msra.mxu0 0.0
        %1274 = vmatpush.msra.mxu0 0.0
        %1275 = vmatpush.msra.mxu0 0.0
        %1276 = vmatpush.msra.mxu0 0.0
        %1277 = vmatpush.msra.mxu0 0.0
        %1278 = vmatpush.msra.mxu0 0.0
        %1279 = vmatpush.msra.mxu0 0.0
        %1280 = vmatpush.msra.mxu0 0.0
        %1281 = vmatpush.msra.mxu0 0.0
        %1282 = vmatpush.msra.mxu0 0.0
        %1283 = vmatpush.msra.mxu0 0.0
        %1284 = vmatpush.msra.mxu0 %v1267
        %1285 = vmatmul.f32.gmra.mxu0 %v1264
        %v1286 = vpop.f32.mrf.mxu0
        %v1287 = vadd.f32 0.0, %v1286
        %1288 = vdwg.mxu0
        %v1290 = vsel %vm1209, %v1208, 0
        %v1293 = vsel %vm1213, %v1092, 0
        %1295 = vmatpush.msra.mxu0 0.0
        %1296 = vmatpush.msra.mxu0 0.0
        %1297 = vmatpush.msra.mxu0 0.0
        %1298 = vmatpush.msra.mxu0 0.0
        %1299 = vmatpush.msra.mxu0 0.0
        %1300 = vmatpush.msra.mxu0 0.0
        %1301 = vmatpush.msra.mxu0 0.0
        %1302 = vmatpush.msra.mxu0 0.0
        %1303 = vmatpush.msra.mxu0 0.0
        %1304 = vmatpush.msra.mxu0 0.0
        %1305 = vmatpush.msra.mxu0 0.0
        %1306 = vmatpush.msra.mxu0 0.0
        %1307 = vmatpush.msra.mxu0 0.0
        %1308 = vmatpush.msra.mxu0 0.0
        %1309 = vmatpush.msra.mxu0 0.0
        %1310 = vmatpush.msra.mxu0 %v1293
        %1311 = vmatmul.f32.gmra.mxu0 %v1290
        %v1312 = vpop.f32.mrf.mxu0
        %v1313 = vadd.f32 0.0, %v1312
        %1314 = vdwg.mxu0
        %vm1315 = vcmask 27648
        %v1316 = vsel %vm1315, %v1205, 0.0
        %1317 = vadd.xlane.f32.xlu0 %v1316
        %v1318 = vpop.xlane.xlu0 %1317
        %v1319 = vsel %vm1315, %v1206, 0.0
        %1320 = vadd.xlane.f32.xlu0 %v1319
        %v1321 = vpop.xlane.xlu0 %1320
        %v1322 = vsel %vm1315, %v1207, 0.0
        %1323 = vadd.xlane.f32.xlu0 %v1322
        %v1324 = vpop.xlane.xlu0 %1323
        %v1325 = vsel %vm1315, %v1208, 0.0
        %1326 = vadd.xlane.f32.xlu0 %v1325
        %v1327 = vpop.xlane.xlu0 %1326
        %v1328 = vadd.f32 %v1318, 1e-16
        %v1329 = vadd.f32 %v1321, 1e-16
        %v1330 = vadd.f32 %v1324, 1e-16
        %v1331 = vadd.f32 %v1327, 1e-16
        %v1332 = vrcp.pop %v1328
        %v1333 = vmul.f32 %v1328, %v1332
        %v1334 = vsub.f32 1.0, %v1333
        %v1335 = vmul.f32 %v1332, %v1334
        %v1336 = vadd.f32 %v1332, %v1335
        %vm1337 = vweird.f32 %v1328
        %vm1338 = vweird.f32 %v1332
        %vm1339 = vmor %vm1337, %vm1338
        %v1340 = vsel %vm1339, %v1332, %v1336
        %v1341 = vand.u32 2147483647, %v1328
        %vm1342 = vcmp.eq.f32.partialorder %v1341, 8.507059e+37
        %v1343 = vand.u32 %v1328, 2147483648
        %v1344 = vor.u32 1.1754944e-38, %v1343
        %v1345 = vsel %vm1342, %v1344, %v1340
        %v1346 = vmul.f32 %v1235, %v1345
        %v1348 = vunpack.c.l.s4 1983009808
        %v1349 = vunpack.c.0.s8 %v1348
        %v1350 = vperm.slane %v1346, %v1349
        %v1351 = vrcp.pop %v1329
        %v1352 = vmul.f32 %v1329, %v1351
        %v1353 = vsub.f32 1.0, %v1352
        %v1354 = vmul.f32 %v1351, %v1353
        %v1355 = vadd.f32 %v1351, %v1354
        %vm1356 = vweird.f32 %v1329
        %vm1357 = vweird.f32 %v1351
        %vm1358 = vmor %vm1356, %vm1357
        %v1359 = vsel %vm1358, %v1351, %v1355
        %v1360 = vand.u32 2147483647, %v1329
        %vm1361 = vcmp.eq.f32.partialorder %v1360, 8.507059e+37
        %v1362 = vand.u32 %v1329, 2147483648
        %v1363 = vor.u32 1.1754944e-38, %v1362
        %v1364 = vsel %vm1361, %v1363, %v1359
        %v1365 = vmul.f32 %v1261, %v1364
        %v1367 = vunpack.c.l.s4 1983009808
        %v1368 = vunpack.c.0.s8 %v1367
        %v1369 = vperm.slane %v1365, %v1368
        %v1370 = vrot.slane %v1369, 4
        %v1371 = vsel %vm808, %v1370, %v1350
        %v1372 = vrot.slane %v1350, 4
        %v1373 = vsel %vm808, %v1369, %v1372
        %v1375 = vunpack.c.l.s4 1934713408
        %v1376 = vunpack.c.0.s8 %v1375
        %v1377 = vperm.slane %v1371, %v1376
        %v1379 = vunpack.c.l.s4 1934713408
        %v1380 = vunpack.c.0.s8 %v1379
        %v1381 = vperm.slane %v1373, %v1380
        %v1382 = vrcp.pop %v1330
        %v1383 = vmul.f32 %v1330, %v1382
        %v1384 = vsub.f32 1.0, %v1383
        %v1385 = vmul.f32 %v1382, %v1384
        %v1386 = vadd.f32 %v1382, %v1385
        %vm1387 = vweird.f32 %v1330
        %vm1388 = vweird.f32 %v1382
        %vm1389 = vmor %vm1387, %vm1388
        %v1390 = vsel %vm1389, %v1382, %v1386
        %v1391 = vand.u32 2147483647, %v1330
        %vm1392 = vcmp.eq.f32.partialorder %v1391, 8.507059e+37
        %v1393 = vand.u32 %v1330, 2147483648
        %v1394 = vor.u32 1.1754944e-38, %v1393
        %v1395 = vsel %vm1392, %v1394, %v1390
        %v1396 = vmul.f32 %v1287, %v1395
        %v1398 = vunpack.c.l.s4 1983009808
        %v1399 = vunpack.c.0.s8 %v1398
        %v1400 = vperm.slane %v1396, %v1399
        %v1401 = vrcp.pop %v1331
        %v1402 = vmul.f32 %v1331, %v1401
        %v1403 = vsub.f32 1.0, %v1402
        %v1404 = vmul.f32 %v1401, %v1403
        %v1405 = vadd.f32 %v1401, %v1404
        %vm1406 = vweird.f32 %v1331
        %vm1407 = vweird.f32 %v1401
        %vm1408 = vmor %vm1406, %vm1407
        %v1409 = vsel %vm1408, %v1401, %v1405
        %v1410 = vand.u32 2147483647, %v1331
        %vm1411 = vcmp.eq.f32.partialorder %v1410, 8.507059e+37
        %v1412 = vand.u32 %v1331, 2147483648
        %v1413 = vor.u32 1.1754944e-38, %v1412
        %v1414 = vsel %vm1411, %v1413, %v1409
        %v1415 = vmul.f32 %v1313, %v1414
        %v1417 = vunpack.c.l.s4 1983009808
        %v1418 = vunpack.c.0.s8 %v1417
        %v1419 = vperm.slane %v1415, %v1418
        %v1420 = vrot.slane %v1419, 4
        %v1421 = vsel %vm808, %v1420, %v1400
        %v1422 = vrot.slane %v1400, 4
        %v1423 = vsel %vm808, %v1419, %v1422
        %v1425 = vunpack.c.l.s4 1934713408
        %v1426 = vunpack.c.0.s8 %v1425
        %v1427 = vperm.slane %v1421, %v1426
        %v1429 = vunpack.c.l.s4 1934713408
        %v1430 = vunpack.c.0.s8 %v1429
        %v1431 = vperm.slane %v1423, %v1430
        %v1432 = vrot.slane %v1427, 4
        %v1433 = vsel %vm808, %v1432, %v1377
        %v1435 = vunpack.c.l.s4 1934713408
        %v1436 = vunpack.c.0.s8 %v1435
        %v1437 = vperm.slane %v1433, %v1436
        %v1438 = vrot.slane %v1437, 4
        %v1439 = vsel %vm808, 0.0, %v1438
        %v1440 = vrot.slane %v1377, 4
        %v1441 = vsel %vm808, 0.0, %v1440
        %v1442 = vsel %vm808, 0.0, %v1432
        %v1443 = vrot.slane %v1442, 4
        %v1444 = vsel %vm808, %v1443, %v1441
        %v1446 = vunpack.c.l.s4 1934713408
        %v1447 = vunpack.c.0.s8 %v1446
        %v1448 = vperm.slane %v1444, %v1447
        %v1449 = vrot.slane %v1448, 4
        %v1450 = vsel %vm808, 0.0, %v1449
        %v1451 = vrot.slane %v1431, 4
        %v1452 = vsel %vm808, %v1451, %v1381
        %v1454 = vunpack.c.l.s4 1934713408
        %v1455 = vunpack.c.0.s8 %v1454
        %v1456 = vperm.slane %v1452, %v1455
        %v1457 = vrot.slane %v1456, 4
        %v1458 = vsel %vm808, 0.0, %v1457
        %v1459 = vrot.slane %v1381, 4
        %v1460 = vsel %vm808, 0.0, %v1459
        %v1461 = vsel %vm808, 0.0, %v1451
        %v1462 = vrot.slane %v1461, 4
        %v1463 = vsel %vm808, %v1462, %v1460
        %v1465 = vunpack.c.l.s4 1934713408
        %v1466 = vunpack.c.0.s8 %v1465
        %v1467 = vperm.slane %v1463, %v1466
        %v1468 = vrot.slane %v1467, 4
        %v1469 = vsel %vm808, 0.0, %v1468
        %1474 = vrot.lane.b32.xlu0 %v1439, 16
        %v1475 = vpop.permute.xlu0 %1474
        %1476 = vrot.lane.b32.xlu0 %v1450, 16
        %v1477 = vpop.permute.xlu0 %1476
        %1478 = vrot.lane.b32.xlu0 %v1458, 16
        %v1479 = vpop.permute.xlu0 %1478
        %1480 = vrot.lane.b32.xlu0 %v1469, 16
        %v1481 = vpop.permute.xlu0 %1480
        %v1486 = vsel %vm1100, %v1437, %v1475
        %v1487 = vsel %vm1100, %v1448, %v1477
        %v1488 = vsel %vm1100, %v1456, %v1479
        %v1489 = vsel %vm1100, %v1467, %v1481
        %v1490 = vld [vmem:[#allocation2] sm:$0x3]
        %v1491 = vld [vmem:[#allocation2 + $0x2] sm:$0x3]
        %v1492 = vld [vmem:[#allocation2 + $0x4] sm:$0x3]
        %v1493 = vld [vmem:[#allocation2 + $0x6] sm:$0x3]
        %v1494 = vadd.f32 %v1490, %v1486
        %v1495 = vadd.f32 %v1491, %v1487
        %v1496 = vadd.f32 %v1492, %v1488
        %v1497 = vadd.f32 %v1493, %v1489
        %vm1498 = vcmask 254976
        %1499 = vst.msk [vmem:[#allocation2] sm:$0x3] %vm1498, %v1494
        %1500 = vst.msk [vmem:[#allocation2 + $0x2] sm:$0x3] %vm1498, %v1495
        %1501 = vst.msk [vmem:[#allocation2 + $0x4] sm:$0x3] %vm1498, %v1496
        %1502 = vst.msk [vmem:[#allocation2 + $0x6] sm:$0x3] %vm1498, %v1497
        %v1503 = vld [vmem:[%s579] sm:$0x1]
        %v1505 = vperm.slane %v1503, 0
        %v1507 = vld [vmem:[%s582] sm:$0x1]
        %v1509 = vperm.slane %v1507, 0
        %v1511 = vld [vmem:[%s590] sm:$0x1]
        %v1513 = vperm.slane %v1511, 0
        %v1515 = vld [vmem:[%s598] sm:$0x1]
        %v1517 = vperm.slane %v1515, 0
        %v1519 = vld [vmem:[%s587] sm:$0xf]
        %v1520 = vld [vmem:[%s587 + $0x4] sm:$0xf]
        %v1521 = vld [vmem:[%s587 + $0x8] sm:$0xf]
        %v1522 = vld [vmem:[%s587 + $0xc] sm:$0xf]
        %v1523 = vld [vmem:[%s595] sm:$0xf]
        %v1524 = vld [vmem:[%s595 + $0x4] sm:$0xf]
        %v1525 = vld [vmem:[%s595 + $0x8] sm:$0xf]
        %v1526 = vld [vmem:[%s595 + $0xc] sm:$0xf]
        %v1527 = vld [vmem:[%s595 + $0x10] sm:$0xf]
        %v1528 = vld [vmem:[%s595 + $0x14] sm:$0xf]
        %v1529 = vld [vmem:[%s595 + $0x18] sm:$0xf]
        %v1530 = vld [vmem:[%s595 + $0x1c] sm:$0xf]
        %v1531 = vld [vmem:[#allocation2] sm:$0x3]
        %v1532 = vld [vmem:[#allocation2 + $0x2] sm:$0x3]
        %v1533 = vld [vmem:[#allocation2 + $0x4] sm:$0x3]
        %v1534 = vld [vmem:[#allocation2 + $0x6] sm:$0x3]
        %1539 = vst [vmem:[#allocation1] ss:$4 sm:$0xff] %v1531
        %s1540 = scalar_lea.vmem [#allocation1], 1
        %1541 = vst [vmem:[%s1540] ss:$4 sm:$0xff] %v1532
        %s1542 = scalar_lea.vmem [#allocation1], 2
        %1543 = vst [vmem:[%s1542] ss:$4 sm:$0xff] %v1533
        %s1544 = scalar_lea.vmem [#allocation1], 3
        %1545 = vst [vmem:[%s1544] ss:$4 sm:$0xff] %v1534
        %v1546 = vld.sshfl [vmem:[#allocation1] sm:$0xff pattern:$0x73625140]
        %v1548 = vsel %vm632, %v1546, 0.0
        %1549 = vadd.xlane.f32.xlu0 %v1548
        %v1550 = vpop.xlane.xlu0 %1549
        %v1551 = vmul.f32 %v1550, %v642
        %v1554 = vunpack.c.l.s4 269488144
        %v1555 = vunpack.c.0.s8 %v1554
        %v1556 = vperm.slane %v1551, %v1555
        %v1558 = vunpack.c.l.s4 842150450
        %v1559 = vunpack.c.0.s8 %v1558
        %v1560 = vperm.slane %v1551, %v1559
        %v1562 = vunpack.c.l.s4 1414812756
        %v1563 = vunpack.c.0.s8 %v1562
        %v1564 = vperm.slane %v1551, %v1563
        %v1566 = vunpack.c.l.s4 1987475062
        %v1567 = vunpack.c.0.s8 %v1566
        %v1568 = vperm.slane %v1551, %v1567
        %v1573 = vsub.f32 %v1531, %v1556
        %v1574 = vsub.f32 %v1532, %v1560
        %v1575 = vsub.f32 %v1533, %v1564
        %v1576 = vsub.f32 %v1534, %v1568
        %v1577 = vmul.f32 %v1573, %v1573
        %v1578 = vmul.f32 %v1574, %v1574
        %v1579 = vmul.f32 %v1575, %v1575
        %v1580 = vmul.f32 %v1576, %v1576
        %1585 = vst [vmem:[#allocation1] ss:$4 sm:$0xff] %v1577
        %s1586 = scalar_lea.vmem [#allocation1], 1
        %1587 = vst [vmem:[%s1586] ss:$4 sm:$0xff] %v1578
        %s1588 = scalar_lea.vmem [#allocation1], 2
        %1589 = vst [vmem:[%s1588] ss:$4 sm:$0xff] %v1579
        %s1590 = scalar_lea.vmem [#allocation1], 3
        %1591 = vst [vmem:[%s1590] ss:$4 sm:$0xff] %v1580
        %v1592 = vld.sshfl [vmem:[#allocation1] sm:$0xff pattern:$0x73625140]
        %v1594 = vsel %vm632, %v1592, 0.0
        %1595 = vadd.xlane.f32.xlu0 %v1594
        %v1596 = vpop.xlane.xlu0 %1595
        %v1597 = vmul.f32 %v1596, %v642
        %v1598 = vadd.f32 %v1597, 1e-05
        %v1599 = vrsqrt.pop %v1598
        %v1600 = vmul.f32 %v1599, %v1598
        %v1601 = vmul.f32 %v1600, %v1599
        %v1602 = vmul.f32 0.5, %v1601
        %v1603 = vsub.f32 1.5, %v1602
        %v1604 = vmul.f32 %v1599, %v1603
        %vm1605 = vweird.f32 %v1598
        %vm1606 = vweird.f32 %v1599
        %vm1607 = vmor %vm1605, %vm1606
        %v1608 = vsel %vm1607, %v1599, %v1604
        %v1611 = vunpack.c.l.s4 269488144
        %v1612 = vunpack.c.0.s8 %v1611
        %v1613 = vperm.slane %v1608, %v1612
        %v1615 = vunpack.c.l.s4 842150450
        %v1616 = vunpack.c.0.s8 %v1615
        %v1617 = vperm.slane %v1608, %v1616
        %v1619 = vunpack.c.l.s4 1414812756
        %v1620 = vunpack.c.0.s8 %v1619
        %v1621 = vperm.slane %v1608, %v1620
        %v1623 = vunpack.c.l.s4 1987475062
        %v1624 = vunpack.c.0.s8 %v1623
        %v1625 = vperm.slane %v1608, %v1624
        %v1630 = vmul.f32 %v1573, %v1613
        %v1631 = vmul.f32 %v1574, %v1617
        %v1632 = vmul.f32 %v1575, %v1621
        %v1633 = vmul.f32 %v1576, %v1625
        %v1634 = vrot.slane %v1505, 2
        %v1635 = vrot.slane %v1505, 4
        %v1636 = vrot.slane %v1505, 6
        %v1640 = vmul.f32 %v1630, %v1505
        %v1641 = vmul.f32 %v1631, %v1634
        %v1642 = vmul.f32 %v1632, %v1635
        %v1643 = vmul.f32 %v1633, %v1636
        %v1644 = vrot.slane %v1509, 2
        %v1645 = vrot.slane %v1509, 4
        %v1646 = vrot.slane %v1509, 6
        %v1650 = vadd.f32 %v1640, %v1509
        %v1651 = vadd.f32 %v1641, %v1644
        %v1652 = vadd.f32 %v1642, %v1645
        %v1653 = vadd.f32 %v1643, %v1646
        %1658 = vst [vmem:[#allocation1] ss:$4 sm:$0xff] %v1650
        %s1659 = scalar_lea.vmem [#allocation1], 1
        %1660 = vst [vmem:[%s1659] ss:$4 sm:$0xff] %v1651
        %s1661 = scalar_lea.vmem [#allocation1], 2
        %1662 = vst [vmem:[%s1661] ss:$4 sm:$0xff] %v1652
        %s1663 = scalar_lea.vmem [#allocation1], 3
        %1664 = vst [vmem:[%s1663] ss:$4 sm:$0xff] %v1653
        %v1665 = vld.sshfl [vmem:[#allocation1] sm:$0xff pattern:$0x73625140]
        %v1667 = vpack.c.bf16 %v1665, %v1665
        %v1672 = vunpack.c.l.b16 %v1519
        %v1673 = vunpack.c.l.b16 %v1520
        %v1674 = vunpack.c.l.b16 %v1521
        %v1675 = vunpack.c.l.b16 %v1522
        %v1676 = vpack.c.b16 %v1673, %v1672
        %v1677 = vpack.c.b16 %v1675, %v1674
        %v1681 = vsel %vm632, %v1667, 0
        %1683 = vmatpush.bf16.msra.mxu0 0
        %1684 = vmatpush.bf16.msra.mxu0 0
        %1685 = vmatpush.bf16.msra.mxu0 0
        %1686 = vmatpush.bf16.msra.mxu0 0
        %1687 = vmatpush.bf16.msra.mxu0 0
        %1688 = vmatpush.bf16.msra.mxu0 0
        %1689 = vmatpush.bf16.msra.mxu0 %v1677
        %1690 = vmatpush.bf16.msra.mxu0 %v1676
        %1691 = vmatmul.bf16.gmra.mxu0 %v1681
        %v1692 = vpop.f32.mrf.mxu0
        %v1693 = vadd.f32 %v1513, %v1692
        %v1694 = vpop.f32.mrf.mxu0
        %1695 = vdwg.mxu0
        %v1696 = vmul.f32 %v1693, 0.5
        %v1697 = vmul.f32 %v1693, 0.044715
        %v1698 = vmul.f32 %v1697, %v1693
        %v1699 = vmul.f32 %v1698, %v1693
        %v1700 = vadd.f32 %v1693, %v1699
        %v1701 = vmul.f32 %v1700, 0.7978846
        %v1702 = vtanh.pop %v1701
        %v1703 = vadd.f32 %v1702, 1.0
        %v1704 = vmul.f32 %v1696, %v1703
        %v1705 = vpack.c.bf16 %v1704, %v1704
        %v1714 = vunpack.c.l.b16 %v1523
        %v1715 = vunpack.c.l.b16 %v1524
        %v1716 = vunpack.c.l.b16 %v1525
        %v1717 = vunpack.c.l.b16 %v1526
        %v1718 = vunpack.c.l.b16 %v1527
        %v1719 = vunpack.c.l.b16 %v1528
        %v1720 = vunpack.c.l.b16 %v1529
        %v1721 = vunpack.c.l.b16 %v1530
        %v1722 = vpack.c.b16 %v1715, %v1714
        %v1723 = vpack.c.b16 %v1717, %v1716
        %v1724 = vpack.c.b16 %v1719, %v1718
        %v1725 = vpack.c.b16 %v1721, %v1720
        %vm1730 = vcmask 523264
        %v1732 = vsel %vm1730, %v1705, 0
        %1734 = vmatpush.bf16.msra.mxu0 0
        %1735 = vmatpush.bf16.msra.mxu0 0
        %1736 = vmatpush.bf16.msra.mxu0 0
        %1737 = vmatpush.bf16.msra.mxu0 0
        %1738 = vmatpush.bf16.msra.mxu0 %v1725
        %1739 = vmatpush.bf16.msra.mxu0 %v1724
        %1740 = vmatpush.bf16.msra.mxu0 %v1723
        %1741 = vmatpush.bf16.msra.mxu0 %v1722
        %1742 = vmatmul.bf16.gmra.mxu0 %v1732
        %v1743 = vpop.f32.mrf.mxu0
        %v1744 = vadd.f32 0.0, %v1743
        %v1745 = vpop.f32.mrf.mxu0
        %1746 = vdwg.mxu0
        %v1748 = vrot.slane %v1744, 2
        %v1749 = vrot.slane %v1744, 4
        %v1750 = vrot.slane %v1744, 6
        %v1754 = vadd.f32 %v1531, %v1744
        %v1755 = vadd.f32 %v1532, %v1748
        %v1756 = vadd.f32 %v1533, %v1749
        %v1757 = vadd.f32 %v1534, %v1750
        %v1758 = vrot.slane %v1517, 2
        %v1759 = vrot.slane %v1517, 4
        %v1760 = vrot.slane %v1517, 6
        %v1764 = vadd.f32 %v1754, %v1517
        %v1765 = vadd.f32 %v1755, %v1758
        %v1766 = vadd.f32 %v1756, %v1759
        %v1767 = vadd.f32 %v1757, %v1760
        %1772 = vst [vmem:[#allocation1] ss:$4 sm:$0xff] %v1764
        %s1773 = scalar_lea.vmem [#allocation1], 1
        %1774 = vst [vmem:[%s1773] ss:$4 sm:$0xff] %v1765
        %s1775 = scalar_lea.vmem [#allocation1], 2
        %1776 = vst [vmem:[%s1775] ss:$4 sm:$0xff] %v1766
        %s1777 = scalar_lea.vmem [#allocation1], 3
        %1778 = vst [vmem:[%s1777] ss:$4 sm:$0xff] %v1767
        %v1779 = vld.sshfl [vmem:[#allocation1] sm:$0xff pattern:$0x73625140]
        %v1781 = vsel %vm632, %v1779, 0.0
        %1782 = vadd.xlane.f32.xlu0 %v1781
        %v1783 = vpop.xlane.xlu0 %1782
        %v1784 = vmul.f32 %v1783, %v642
        %v1787 = vunpack.c.l.s4 269488144
        %v1788 = vunpack.c.0.s8 %v1787
        %v1789 = vperm.slane %v1784, %v1788
        %v1791 = vunpack.c.l.s4 842150450
        %v1792 = vunpack.c.0.s8 %v1791
        %v1793 = vperm.slane %v1784, %v1792
        %v1795 = vunpack.c.l.s4 1414812756
        %v1796 = vunpack.c.0.s8 %v1795
        %v1797 = vperm.slane %v1784, %v1796
        %v1799 = vunpack.c.l.s4 1987475062
        %v1800 = vunpack.c.0.s8 %v1799
        %v1801 = vperm.slane %v1784, %v1800
        %v1806 = vsub.f32 %v1764, %v1789
        %v1807 = vsub.f32 %v1765, %v1793
        %v1808 = vsub.f32 %v1766, %v1797
        %v1809 = vsub.f32 %v1767, %v1801
        %v1810 = vmul.f32 %v1806, %v1806
        %v1811 = vmul.f32 %v1807, %v1807
        %v1812 = vmul.f32 %v1808, %v1808
        %v1813 = vmul.f32 %v1809, %v1809
        %1818 = vst [vmem:[#allocation1] ss:$4 sm:$0xff] %v1810
        %s1819 = scalar_lea.vmem [#allocation1], 1
        %1820 = vst [vmem:[%s1819] ss:$4 sm:$0xff] %v1811
        %s1821 = scalar_lea.vmem [#allocation1], 2
        %1822 = vst [vmem:[%s1821] ss:$4 sm:$0xff] %v1812
        %s1823 = scalar_lea.vmem [#allocation1], 3
        %1824 = vst [vmem:[%s1823] ss:$4 sm:$0xff] %v1813
        %v1825 = vld.sshfl [vmem:[#allocation1] sm:$0xff pattern:$0x73625140]
        %v1827 = vsel %vm632, %v1825, 0.0
        %1828 = vadd.xlane.f32.xlu0 %v1827
        %v1829 = vpop.xlane.xlu0 %1828
        %v1830 = vmul.f32 %v1829, %v642
        %v1831 = vadd.f32 %v1830, 1e-05
        %v1832 = vrsqrt.pop %v1831
        %v1833 = vmul.f32 %v1832, %v1831
        %v1834 = vmul.f32 %v1833, %v1832
        %v1835 = vmul.f32 0.5, %v1834
        %v1836 = vsub.f32 1.5, %v1835
        %v1837 = vmul.f32 %v1832, %v1836
        %vm1838 = vweird.f32 %v1831
        %vm1839 = vweird.f32 %v1832
        %vm1840 = vmor %vm1838, %vm1839
        %v1841 = vsel %vm1840, %v1832, %v1837
        %v1844 = vunpack.c.l.s4 269488144
        %v1845 = vunpack.c.0.s8 %v1844
        %v1846 = vperm.slane %v1841, %v1845
        %v1848 = vunpack.c.l.s4 842150450
        %v1849 = vunpack.c.0.s8 %v1848
        %v1850 = vperm.slane %v1841, %v1849
        %v1852 = vunpack.c.l.s4 1414812756
        %v1853 = vunpack.c.0.s8 %v1852
        %v1854 = vperm.slane %v1841, %v1853
        %v1856 = vunpack.c.l.s4 1987475062
        %v1857 = vunpack.c.0.s8 %v1856
        %v1858 = vperm.slane %v1841, %v1857
        %v1863 = vmul.f32 %v1806, %v1846
        %v1864 = vmul.f32 %v1807, %v1850
        %v1865 = vmul.f32 %v1808, %v1854
        %v1866 = vmul.f32 %v1809, %v1858
        %v1867 = vmul.f32 %v1863, %v1505
        %v1868 = vmul.f32 %v1864, %v1634
        %v1869 = vmul.f32 %v1865, %v1635
        %v1870 = vmul.f32 %v1866, %v1636
        %v1871 = vadd.f32 %v1867, %v1509
        %v1872 = vadd.f32 %v1868, %v1644
        %v1873 = vadd.f32 %v1869, %v1645
        %v1874 = vadd.f32 %v1870, %v1646
        %1879 = vst [vmem:[#allocation1] ss:$4 sm:$0xff] %v1871
        %s1880 = scalar_lea.vmem [#allocation1], 1
        %1881 = vst [vmem:[%s1880] ss:$4 sm:$0xff] %v1872
        %s1882 = scalar_lea.vmem [#allocation1], 2
        %1883 = vst [vmem:[%s1882] ss:$4 sm:$0xff] %v1873
        %s1884 = scalar_lea.vmem [#allocation1], 3
        %1885 = vst [vmem:[%s1884] ss:$4 sm:$0xff] %v1874
        %v1886 = vld.sshfl [vmem:[#allocation1] sm:$0xff pattern:$0x73625140]
        %v1888 = vpack.c.bf16 %v1886, %v1886
        %v1890 = vsel %vm632, %v1888, 0
        %1892 = vmatpush.bf16.msra.mxu0 0
        %1893 = vmatpush.bf16.msra.mxu0 0
        %1894 = vmatpush.bf16.msra.mxu0 0
        %1895 = vmatpush.bf16.msra.mxu0 0
        %1896 = vmatpush.bf16.msra.mxu0 0
        %1897 = vmatpush.bf16.msra.mxu0 0
        %1898 = vmatpush.bf16.msra.mxu0 %v1677
        %1899 = vmatpush.bf16.msra.mxu0 %v1676
        %1900 = vmatmul.bf16.gmra.mxu0 %v1890
        %v1901 = vpop.f32.mrf.mxu0
        %v1902 = vadd.f32 %v1513, %v1901
        %v1903 = vpop.f32.mrf.mxu0
        %1904 = vdwg.mxu0
        %v1905 = vmul.f32 %v1902, 0.5
        %v1906 = vmul.f32 %v1902, 0.044715
        %v1907 = vmul.f32 %v1906, %v1902
        %v1908 = vmul.f32 %v1907, %v1902
        %v1909 = vadd.f32 %v1902, %v1908
        %v1910 = vmul.f32 %v1909, 0.7978846
        %v1911 = vtanh.pop %v1910
        %v1912 = vadd.f32 %v1911, 1.0
        %v1913 = vmul.f32 %v1905, %v1912
        %v1914 = vpack.c.bf16 %v1913, %v1913
        %v1916 = vsel %vm1730, %v1914, 0
        %1918 = vmatpush.bf16.msra.mxu0 0
        %1919 = vmatpush.bf16.msra.mxu0 0
        %1920 = vmatpush.bf16.msra.mxu0 0
        %1921 = vmatpush.bf16.msra.mxu0 0
        %1922 = vmatpush.bf16.msra.mxu0 %v1725
        %1923 = vmatpush.bf16.msra.mxu0 %v1724
        %1924 = vmatpush.bf16.msra.mxu0 %v1723
        %1925 = vmatpush.bf16.msra.mxu0 %v1722
        %1926 = vmatmul.bf16.gmra.mxu0 %v1916
        %v1927 = vpop.f32.mrf.mxu0
        %v1928 = vadd.f32 0.0, %v1927
        %v1929 = vpop.f32.mrf.mxu0
        %1930 = vdwg.mxu0
        %v1932 = vrot.slane %v1928, 2
        %v1933 = vrot.slane %v1928, 4
        %v1934 = vrot.slane %v1928, 6
        %v1938 = vadd.f32 %v1764, %v1928
        %v1939 = vadd.f32 %v1765, %v1932
        %v1940 = vadd.f32 %v1766, %v1933
        %v1941 = vadd.f32 %v1767, %v1934
        %v1942 = vadd.f32 %v1938, %v1517
        %v1943 = vadd.f32 %v1939, %v1758
        %v1944 = vadd.f32 %v1940, %v1759
        %v1945 = vadd.f32 %v1941, %v1760
        %1946 = vst.msk [vmem:[#allocation2] sm:$0x3] %vm1498, %v1942
        %1947 = vst.msk [vmem:[#allocation2 + $0x2] sm:$0x3] %vm1498, %v1943
        %1948 = vst.msk [vmem:[#allocation2 + $0x4] sm:$0x3] %vm1498, %v1944
        %1949 = vst.msk [vmem:[#allocation2 + $0x6] sm:$0x3] %vm1498, %v1945
        %p1950 = scmp.eq.s32.totalorder %s30, 1
        // Predicated region
        $region77: #{tpu_custom_call.1} parent=71 // pred_check
          %p1951 = pneg %p1950
        $region78: #{tpu_custom_call.1} parent=71 // pred_check_branch
          %1953 = sbr.rel (%p1951) target = $region80
        $region79: #{tpu_custom_call.1} parent=71 // pred_region
          %s1954 = scalar_lea.vmem [#allocation2], 6
          %v1955 = vld [vmem:[%s1954] sm:$0x3]
          %v1956 = vpack.c.bf16 %v1955, %v1955
          %v1957 = vld [vmem:[%s11] sm:$0xf]
          %v1958 = vld [vmem:[%s11 + $0x4] sm:$0xf]
          %v1959 = vld [vmem:[%s11 + $0x8] sm:$0xf]
          %v1960 = vld [vmem:[%s11 + $0xc] sm:$0xf]
          %v1961 = vld [vmem:[%s12] sm:$0x1]
          %v1963 = vperm.slane %v1961, 0
          %v1969 = vunpack.c.l.b16 %v1957
          %v1970 = vunpack.c.l.b16 %v1958
          %v1971 = vunpack.c.l.b16 %v1959
          %v1972 = vunpack.c.l.b16 %v1960
          %v1973 = vpack.c.b16 %v1970, %v1969
          %v1974 = vpack.c.b16 %v1972, %v1971
          %v1978 = vsel %vm632, %v1956, 0
          %1980 = vmatpush.bf16.msra.mxu0 0
          %1981 = vmatpush.bf16.msra.mxu0 0
          %1982 = vmatpush.bf16.msra.mxu0 0
          %1983 = vmatpush.bf16.msra.mxu0 0
          %1984 = vmatpush.bf16.msra.mxu0 0
          %1985 = vmatpush.bf16.msra.mxu0 0
          %1986 = vmatpush.bf16.msra.mxu0 %v1974
          %1987 = vmatpush.bf16.msra.mxu0 %v1973
          %1988 = vmatmul.bf16.gmra.mxu0 %v1978
          %v1989 = vpop.f32.mrf.mxu0
          %v1990 = vadd.f32 %v1963, %v1989
          %v1991 = vpop.f32.mrf.mxu0
          %1992 = vdwg.mxu0
          %vm1993 = vcmask 1041408
          %v1994 = vsel %vm1993, %v1990, -inf
          %1995 = vmax.xlane.f32.xlu0 %v1994
          %v1996 = vpop.xlane.xlu0 %1995
          %v1997 = vsub.f32 %v1990, %v1996
          %v1998 = vmul.f32 %v1997, 1.442695
          %v1999 = vpow.pop %v1998
          %v2000 = vsel %vm1993, %v1999, 0.0
          %2001 = vadd.xlane.f32.xlu0 %v2000
          %v2002 = vpop.xlane.xlu0 %2001
          %v2003 = vlog2.pop %v2002
          %v2004 = vmul.f32 %v2003, 0.6931472
          %v2005 = vsub.f32 %v1997, %v2004
          %2006 = vst [vmem:[#allocation3] sm:$0x3] %v2005
        $region80: #{tpu_custom_call.1} parent=71 // pred_fallthru
          _
        // Predicated region
        $region81: #{tpu_custom_call.1} parent=71 // pred_check
          %p2007 = pneg %p383
        $region82: #{tpu_custom_call.1} parent=71 // pred_check_branch
          %2009 = sbr.rel (%p2007) target = $region84
        $region83: #{tpu_custom_call.1} parent=71 // pred_region
          %2011 = vsyncadd [#allocation4], 0
          %s2012 = smul.addr %s29, 2
          %s2013 = scalar_lea.hbm %s13, %s2012
          %s2015 = sshll.u32 [#allocation3], 4
          %s2016 = int_to_ptr.vmem [resolvable:$true] %s2015
          %s2017 = sshll.u32 %s2013, 4
          %s2018 = int_to_ptr.hbm [resolvable:$true] %s2017
          %2020 = dma.vmem_to_hbm [thread:$0]  %s2016, 32, %s2018, [#allocation4]
        $region84: #{tpu_custom_call.1} parent=71 // pred_fallthru
          _
        // Predicated region
        $region85: #{tpu_custom_call.1} parent=71 // pred_check
          %p2021 = pneg %p383
        $region86: #{tpu_custom_call.1} parent=71 // pred_check_branch
          %2023 = sbr.rel (%p2021) target = $region88
        $region87: #{tpu_custom_call.1} parent=71 // pred_region
          %2025 = dma.done [#allocation4], 32
        $region88: #{tpu_custom_call.1} parent=71 // pred_fallthru
          _
      $region72: #{tpu_custom_call.1} parent=5 // pred_fallthru
        _
      %p2026 = scmp.le.s32.totalorder 2, %s20
      // Predicated region
      $region89: #{tpu_custom_call.1} parent=5 // pred_check
        %p2027 = pneg %p2026
      $region90: #{tpu_custom_call.1} parent=5 // pred_check_branch
        %2029 = sbr.rel (%p2027) target = $region92
      $region91: #{tpu_custom_call.1} parent=5 // pred_region
        %s2030 = ssub.s32 %s20, 2
      $region92: #{tpu_custom_call.1} parent=5 // pred_fallthru
        _
    $region6: #{tpu_custom_call.1} parent=1 // loop_footer
      %s24 = sadd.s32 1, %s20
    $region7: #{tpu_custom_call.1} parent=1 // loop_footer_branch
      %19 = sbr.rel target = $region3
    $region8: #{tpu_custom_call.1} parent=1 // loop_exit
      _
    %2031 = vsyncpa [#allocation4], 1
    %s2032 = scalar_lea.sflag [#allocation4], 1
    %2033 = vsyncpa %s2032, 1

</llo_original>
